<compile_context>
chip_gen: v6e
topology: v6e:2x2x1
jax: 0.10.0
libtpu: 0.0.40
codegen_flags: <defaults>
</compile_context>

<pallas_src>
import math

import jax
import jax.numpy as jnp
from jax.experimental import pallas as pl
from jax.experimental.pallas import tpu as pltpu


_BLOCK_BUDGET = 8 * 1024 * 1024   # target bytes per output block (review: ~8 MiB)


def _cdiv(a, b):
    return -(-a // b)


def _round_up(x, m):
    return _cdiv(x, m) * m


def _pick_tile(dim, unit, max_bytes, bytes_per_row, want_split=False):
    """Tile size along `dim`: either the full dim or a multiple of `unit`
    (the TPU (8,128) block-shape rule). Stays under `max_bytes`, prefers exact
    divisors, and (if `want_split`) keeps >=2 grid steps so both v7x TCs get work."""
    if dim <= unit:
        return dim
    max_tile = min(dim, max(unit, max_bytes // max(bytes_per_row, 1)))
    if want_split:
        max_tile = min(max_tile, _round_up(_cdiv(dim, 2), unit))
    max_tile = max(unit, (max_tile // unit) * unit)
    if dim <= max_tile:
        return dim
    best = None
    for t in range(unit, max_tile + 1, unit):
        if dim % t == 0:
            best = t
    # No clean divisor: use a multiple of `unit`; the grid uses cdiv and Pallas
    # clips the ragged last block.
    return best if best is not None else max_tile


def _vmem_limit(block_elems):
    """Scoped-VMEM cap: 1.25x the double-buffered estimate, 8 MiB granularity,
    <=48 MiB (headroom for Mosaic scratch on v7x's 64 MiB VMEM); None if tiny."""
    est = 2 * 4 * sum(block_elems)
    if est <= 12 * 1024 * 1024:
        return None
    return min(48 * 1024 * 1024, _round_up(int(est * 1.25), 8 * 1024 * 1024))


# ----------------------------- kernels --------------------------------------

def _nomask_nchw_kernel(yt_ref, xt_ref, out_ref):
    # yt_ref: (tc, H, 1)  -- sin table for the y channel-half, zeros elsewhere
    # xt_ref: (tc, 1, tw) -- sin table for the x channel-half, zeros elsewhere
    # out_ref: (1, tc, H, tw); complementary halves => one add assembles the block.
    out_ref[0] = (yt_ref[...] + xt_ref[...]).astype(out_ref.dtype)


def _nomask_nhwc_kernel(yp_ref, xp_ref, out_ref):
    # yp_ref: (th, 1, F2); xp_ref: (1, tw, F2); out_ref: (1, th, tw, F2)
    out_ref[0] = (yp_ref[...] + xp_ref[...]).astype(out_ref.dtype)


def _masked_nchw_kernel(y_ref, x_ref, p_ref, out_ref):
    # y_ref/x_ref: (1, th, tw); p_ref: (3, F2); out_ref: (1, F2, th, tw)
    cy = p_ref[0][:, None, None]   # 1/dim_t on the y half, 0 on the x half
    cx = p_ref[1][:, None, None]   # 0 on the y half, 1/dim_t on the x half
    ph = p_ref[2][:, None, None]   # phase: cos(t) == sin(t + pi/2)
    arg = y_ref[0][None, :, :] * cy + x_ref[0][None, :, :] * cx + ph
    out_ref[0] = jnp.sin(arg).astype(out_ref.dtype)


def _masked_nhwc_kernel(y_ref, x_ref, p_ref, out_ref):
    # y_ref/x_ref: (1, th, tw, 1) (unit minor dim -> cheap lane broadcast)
    # p_ref: (3, F2); out_ref: (1, th, tw, F2)
    arg = y_ref[0] * p_ref[0] + x_ref[0] * p_ref[1] + p_ref[2]
    out_ref[0] = jnp.sin(arg).astype(out_ref.dtype)


# ----------------------------- wrapper ---------------------------------------

def position_embedding_sine(x, mask=None, *, num_pos_feats=64, temperature=10000,
                            normalize=False, scale=None, channels_last=False,
                            out_dtype=jnp.float32):
    """JAX/Pallas equivalent of PositionEmbeddingSine.forward.

    x:    (B, C, H, W) -- only its shape is used (as in the PyTorch module).
    mask: optional bool (B, H, W); True = padded pixel.
    Returns (B, 2*num_pos_feats, H, W) by default (PyTorch NCHW layout, written
    directly by the kernel -- no transpose pass), or (B, H, W, 2*num_pos_feats)
    when channels_last=True.
    """
    if scale is not None and normalize is False:
        raise ValueError("normalize should be True if scale is passed")
    if scale is None:
        scale = 2 * math.pi
    scale = float(scale)

    B, _, H, W = x.shape
    F = num_pos_feats
    F2 = 2 * F
    eps = 1e-6

    k = jnp.arange(F, dtype=jnp.float32)
    dim_t = (float(temperature) ** (2.0 * jnp.floor(k / 2.0) / F)).astype(jnp.float32)
    inv_dim_t = 1.0 / dim_t                                     # exact reciprocal, once
    phase = (k % 2).astype(jnp.float32) * (math.pi / 2.0)       # cos(t) == sin(t + pi/2)

    if mask is None:
        # ---------------- no-mask fast path: sin factored onto tiny tables ----------
        h_val = jnp.arange(1, H + 1, dtype=jnp.float32)          # closed-form cumsum
        w_val = jnp.arange(1, W + 1, dtype=jnp.float32)
        if normalize:
            h_val = h_val / (H + eps) * scale
            w_val = w_val / (W + eps) * scale
        y_tab = jnp.sin(h_val[:, None] * inv_dim_t[None, :] + phase[None, :])   # (H, F)
        x_tab = jnp.sin(w_val[:, None] * inv_dim_t[None, :] + phase[None, :])   # (W, F)
        ypad = jnp.concatenate([y_tab, jnp.zeros((H, F), jnp.float32)], axis=1)  # (H, 2F)
        xpad = jnp.concatenate([jnp.zeros((W, F), jnp.float32), x_tab], axis=1)  # (W, 2F)

        if channels_last:
            th = _pick_tile(H, 8, _BLOCK_BUDGET, W * F2 * 4, want_split=(H >= 16))
            tw = W
            if th * W * F2 * 4 > _BLOCK_BUDGET and W > 8:
                tw = _pick_tile(W, 8, _BLOCK_BUDGET, th * F2 * 4)
            grid = (_cdiv(H, th), _cdiv(W, tw))
            blocks = [th * F2, tw * F2, th * tw * F2]
            out = pl.pallas_call(
                _nomask_nhwc_kernel,
                out_shape=jax.ShapeDtypeStruct((1, H, W, F2), out_dtype),
                grid=grid,
                in_specs=[pl.BlockSpec((th, 1, F2), lambda h, w: (h, 0, 0)),
                          pl.BlockSpec((1, tw, F2), lambda h, w: (0, w, 0))],
                out_specs=pl.BlockSpec((1, th, tw, F2), lambda h, w: (0, h, w, 0)),
                compiler_params=pltpu.CompilerParams(
                    dimension_semantics=("parallel", "parallel"),
                    vmem_limit_bytes=_vmem_limit(blocks)),
            )(ypad[:, None, :], xpad[None, :, :])
            return jnp.broadcast_to(out, (B, H, W, F2))          # batch-invariant

        # NCHW written directly by the kernel (no NHWC->NCHW HBM transpose pass).
        yt3 = ypad.T[:, :, None]                                 # (2F, H, 1) -- tiny
        xt3 = xpad.T[:, None, :]                                 # (2F, 1, W)
        tc = _pick_tile(F2, 8, _BLOCK_BUDGET, H * W * 4, want_split=(F2 >= 16))
        tw = W
        if tc * H * W * 4 > _BLOCK_BUDGET and W > 128:
            tw = _pick_tile(W, 128, _BLOCK_BUDGET, tc * H * 4)
        grid = (_cdiv(F2, tc), _cdiv(W, tw))
        blocks = [tc * H, tc * tw, tc * H * tw]
        out = pl.pallas_call(
            _nomask_nchw_kernel,
            out_shape=jax.ShapeDtypeStruct((1, F2, H, W), out_dtype),
            grid=grid,
            in_specs=[pl.BlockSpec((tc, H, 1), lambda c, w: (c, 0, 0)),
                      pl.BlockSpec((tc, 1, tw), lambda c, w: (c, 0, w))],
            out_specs=pl.BlockSpec((1, tc, H, tw), lambda c, w: (0, c, 0, w)),
            compiler_params=pltpu.CompilerParams(
                dimension_semantics=("parallel", "parallel"),
                vmem_limit_bytes=_vmem_limit(blocks)),
        )(yt3, xt3)
        return jnp.broadcast_to(out, (B, F2, H, W))              # batch-invariant

    # ---------------- masked path: cumsum/normalize once in XLA, sin in-kernel -----
    not_mask = jnp.logical_not(mask).astype(jnp.float32)
    y_embed = jnp.cumsum(not_mask, axis=1)
    x_embed = jnp.cumsum(not_mask, axis=2)
    if normalize:
        y_embed = y_embed / (y_embed[:, -1:, :] + eps) * scale
        x_embed = x_embed / (x_embed[:, :, -1:] + eps) * scale

    zeros_f = jnp.zeros((F,), jnp.float32)
    cy = jnp.concatenate([inv_dim_t, zeros_f])      # y coefficient, 0 on the x half
    cx = jnp.concatenate([zeros_f, inv_dim_t])      # 0 on the y half, x coefficient
    ph = jnp.concatenate([phase, phase])
    params = jnp.stack([cy, cx, ph]).astype(jnp.float32)         # (3, 2F)

    want_split = (B == 1 and H >= 16)
    th = _pick_tile(H, 8, _BLOCK_BUDGET, W * F2 * 4, want_split=want_split)
    w_unit = 8 if channels_last else 128
    tw = W
    if th * W * F2 * 4 > _BLOCK_BUDGET and W > w_unit:
        tw = _pick_tile(W, w_unit, _BLOCK_BUDGET, th * F2 * 4)
    grid = (B, _cdiv(H, th), _cdiv(W, tw))
    sem = ("parallel", "parallel", "parallel")

    if channels_last:
        y4 = y_embed[..., None]       # (B, H, W, 1): unit minor dim -> lane broadcast
        x4 = x_embed[..., None]
        blocks = [th * tw, th * tw, 3 * F2, th * tw * F2]
        return pl.pallas_call(
            _masked_nhwc_kernel,
            out_shape=jax.ShapeDtypeStruct((B, H, W, F2), out_dtype),
            grid=grid,
            in_specs=[pl.BlockSpec((1, th, tw, 1), lambda b, h, w: (b, h, w, 0)),
                      pl.BlockSpec((1, th, tw, 1), lambda b, h, w: (b, h, w, 0)),
                      pl.BlockSpec((3, F2), lambda b, h, w: (0, 0))],
            out_specs=pl.BlockSpec((1, th, tw, F2), lambda b, h, w: (b, h, w, 0)),
            compiler_params=pltpu.CompilerParams(
                dimension_semantics=sem, vmem_limit_bytes=_vmem_limit(blocks)),
        )(y4, x4, params)

    blocks = [th * tw, th * tw, 3 * F2, F2 * th * tw]
    return pl.pallas_call(
        _masked_nchw_kernel,
        out_shape=jax.ShapeDtypeStruct((B, F2, H, W), out_dtype),
        grid=grid,
        in_specs=[pl.BlockSpec((1, th, tw), lambda b, h, w: (b, h, w)),
                  pl.BlockSpec((1, th, tw), lambda b, h, w: (b, h, w)),
                  pl.BlockSpec((3, F2), lambda b, h, w: (0, 0))],
        out_specs=pl.BlockSpec((1, F2, th, tw), lambda b, h, w: (b, 0, h, w)),
        compiler_params=pltpu.CompilerParams(
            dimension_semantics=sem, vmem_limit_bytes=_vmem_limit(blocks)),
    )(y_embed, x_embed, params)


# ----------------------------- reference & test -------------------------------

def _reference(x, mask=None, *, num_pos_feats=64, temperature=10000,
               normalize=False, scale=None):
    """Pure-JAX port of the PyTorch forward, for verification."""
    if scale is None:
        scale = 2 * math.pi
    B, _, H, W = x.shape
    if mask is None:
        not_mask = jnp.ones((B, H, W), jnp.float32)
    else:
        not_mask = (~mask).astype(jnp.float32)
    y_embed = jnp.cumsum(not_mask, axis=1)
    x_embed = jnp.cumsum(not_mask, axis=2)
    if normalize:
        eps = 1e-6
        y_embed = y_embed / (y_embed[:, -1:, :] + eps) * scale
        x_embed = x_embed / (x_embed[:, :, -1:] + eps) * scale
    k = jnp.arange(num_pos_feats, dtype=jnp.float32)
    dim_t = temperature ** (2.0 * jnp.floor(k / 2.0) / num_pos_feats)
    pos_x = x_embed[:, :, :, None] / dim_t
    pos_y = y_embed[:, :, :, None] / dim_t
    pos_x = jnp.stack((jnp.sin(pos_x[..., 0::2]), jnp.cos(pos_x[..., 1::2])),
                      axis=4).reshape(B, H, W, num_pos_feats)
    pos_y = jnp.stack((jnp.sin(pos_y[..., 0::2]), jnp.cos(pos_y[..., 1::2])),
                      axis=4).reshape(B, H, W, num_pos_feats)
    pos = jnp.concatenate((pos_y, pos_x), axis=3).transpose(0, 3, 1, 2)
    return pos


if __name__ == "__main__":
    key = jax.random.PRNGKey(0)
    B, C, H, W = 2, 4, 16, 16
    num_pos_feats = 64
    x = jax.random.normal(key, (B, C, H, W), dtype=jnp.float32)

    # Case 1: module defaults (mask=None, normalize=False) -> table fast path, NCHW direct.
    pos1 = position_embedding_sine(x, num_pos_feats=num_pos_feats)
    jax.block_until_ready(pos1)
    ref1 = _reference(x, num_pos_feats=num_pos_feats)
    assert pos1.shape == (B, 2 * num_pos_feats, H, W)
    assert jnp.allclose(pos1, ref1, atol=2e-5, rtol=2e-5)

    # Case 2: non-trivial padding mask + normalize=True -> masked NCHW-direct path.
    mask = jnp.zeros((B, H, W), dtype=bool).at[:, :, 12:].set(True)
    mask = mask.at[:, 14:, :].set(True)
    pos2 = position_embedding_sine(x, mask, num_pos_feats=num_pos_feats, normalize=True)
    jax.block_until_ready(pos2)
    ref2 = _reference(x, mask, num_pos_feats=num_pos_feats, normalize=True)
    assert jnp.allclose(pos2, ref2, atol=2e-5, rtol=2e-5)

    # Case 3: channels_last, no mask (NHWC table path, no transpose anywhere).
    pos3 = position_embedding_sine(x, num_pos_feats=num_pos_feats, channels_last=True)
    jax.block_until_ready(pos3)
    assert pos3.shape == (B, H, W, 2 * num_pos_feats)
    assert jnp.allclose(jnp.transpose(pos3, (0, 3, 1, 2)), ref1, atol=2e-5, rtol=2e-5)

    # Case 4: channels_last, masked + normalize (NHWC masked kernel).
    pos4 = position_embedding_sine(x, mask, num_pos_feats=num_pos_feats,
                                   normalize=True, channels_last=True)
    jax.block_until_ready(pos4)
    assert jnp.allclose(jnp.transpose(pos4, (0, 3, 1, 2)), ref2, atol=2e-5, rtol=2e-5)

    print("KERNEL_OK")
</pallas_src>

<mosaic_0001>
module attributes {stable_mosaic.version = 11 : i64} {
  func.func @_nomask_nchw_kernel(%arg0: i32, %arg1: i32, %arg2: memref<64x16x1xf32, #tpu.memory_space<vmem>>, %arg3: memref<64x1x16xf32, #tpu.memory_space<vmem>>, %arg4: memref<1x64x16x16xf32, #tpu.memory_space<vmem>>) attributes {dimension_semantics = [#tpu.dimension_semantics<parallel>, #tpu.dimension_semantics<parallel>], iteration_bounds = array<i64: 2, 1>, scalar_prefetch = 0 : i64, scratch_operands = 0 : i64, tpu.core_type = #tpu.core_type<tc>, window_params = [{transform_indices = @transform_0, window_bounds = array<i64: 64, 16, 1>}, {transform_indices = @transform_1, window_bounds = array<i64: 64, 1, 16>}, {transform_indices = @transform_2, window_bounds = array<i64: 1, 64, 16, 16>}]} {
    %c0 = arith.constant 0 : index
    %c0_0 = arith.constant 0 : index
    %c0_1 = arith.constant 0 : index
    %0 = vector.load %arg2[%c0, %c0_0, %c0_1] : memref<64x16x1xf32, #tpu.memory_space<vmem>>, vector<64x16x1xf32>
    %c0_2 = arith.constant 0 : index
    %c0_3 = arith.constant 0 : index
    %c0_4 = arith.constant 0 : index
    %1 = vector.load %arg3[%c0_2, %c0_3, %c0_4] : memref<64x1x16xf32, #tpu.memory_space<vmem>>, vector<64x1x16xf32>
    %2 = vector.broadcast %0 : vector<64x16x1xf32> to vector<64x16x16xf32>
    %3 = vector.broadcast %1 : vector<64x1x16xf32> to vector<64x16x16xf32>
    %4 = arith.addf %2, %3 : vector<64x16x16xf32>
    %c0_5 = arith.constant 0 : index
    %c0_6 = arith.constant 0 : index
    %c0_7 = arith.constant 0 : index
    %c0_8 = arith.constant 0 : index
    %5 = vector.load %arg4[%c0_5, %c0_6, %c0_7, %c0_8] : memref<1x64x16x16xf32, #tpu.memory_space<vmem>>, vector<1x64x16x16xf32>
    %6 = vector.shape_cast %5 : vector<1x64x16x16xf32> to vector<64x16x16xf32>
    %7 = vector.shape_cast %4 : vector<64x16x16xf32> to vector<1x64x16x16xf32>
    tpu.vector_store %arg4[%c0_5, %c0_6, %c0_7, %c0_8], %7 {strides = array<i32>} : memref<1x64x16x16xf32, #tpu.memory_space<vmem>>, vector<1x64x16x16xf32>,
    return
  }
  func.func @transform_0(%arg0: i32, %arg1: i32) -> (i32, i32, i32) {
    %c0_i32 = arith.constant 0 : i32
    %c0_i32_0 = arith.constant 0 : i32
    %c0_i32_1 = arith.constant 0 : i32
    return %arg0, %c0_i32, %c0_i32_0 : i32, i32, i32
  }
  func.func @transform_1(%arg0: i32, %arg1: i32) -> (i32, i32, i32) {
    %c0_i32 = arith.constant 0 : i32
    %c0_i32_0 = arith.constant 0 : i32
    return %arg0, %c0_i32, %arg1 : i32, i32, i32
  }
  func.func @transform_2(%arg0: i32, %arg1: i32) -> (i32, i32, i32, i32) {
    %c0_i32 = arith.constant 0 : i32
    %c0_i32_0 = arith.constant 0 : i32
    %c0_i32_1 = arith.constant 0 : i32
    return %c0_i32, %arg0, %c0_i32_0, %arg1 : i32, i32, i32, i32
  }
}

</mosaic_0001>

<llo_original>
// kernel: tpu_custom_call.1
$region0: #{tpu_custom_call.1}
  #allocation0 [shape = 'u32[]', space=smem, size = 0x4, offset = 0x4, fixed_abs, tag = 'smem constant byte address 0x4 - core index']
  #allocation1 [shape = 'u32[144,128]{1,0:T(1,128)}', space=vmem, size = 0x12000, scoped, tag = 'internal scratch']
  %s0 = inlined_call_operand.vmem [shape: f32[128,16,1], index: 0, kind: input, shape index: {}]
  %s1 = inlined_call_operand.vmem [shape: f32[128,1,16], index: 1, kind: input, shape index: {}]
  %s2 = inlined_call_operand.vmem [shape: f32[1,128,16,16], index: 2, kind: output, shape index: {}]
  %s3 = sld [smem:[#allocation0]]
  $region41: #{tpu_custom_call.1} parent=0
    _
  %s5 = ssub.s32 1, %s3
  %s6 = scalar_select 0, %s5, %s3
  loop: start=0, step=1, limit=4
  $region2: #{tpu_custom_call.1} parent=0 // loop_pre_header
    _
  $region3: #{tpu_custom_call.1} parent=0 // loop_header
    %s8 = sphi 0, %s12
    %p9 = scmp.ge.s32.totalorder %s8, 4
    %s15 = sphi 0, %s27
    %s16 = sphi 0, %s23
    %s17 = sphi 0, %s15
    %s18 = sphi 0, %s16
    %s19 = sphi 0, %s17
    %s20 = sphi 0, %s18
    %s30 = sphi 0, %s32
    %s33 = sphi 0, %s30
    %s34 = sphi 0, %s33
    %s50 = sphi 0, %s34
    %s58 = sphi 0, %s60
    %s61 = sphi 0, %s58
    %s62 = sphi 0, %s61
    %s78 = sphi 0, %s62
    %s86 = sphi 0, %s88
    %s89 = sphi 0, %s86
    %s90 = sphi 0, %s89
    %s106 = sphi 0, %s90
  $region4: #{tpu_custom_call.1} parent=0 // loop_header_branch
    %11 = sbr.rel (%p9) target = $region8
  $region5: #{tpu_custom_call.1} parent=0 // loop_body
    %s13 = ssub.s32 %s8, 1
    %s14 = ssub.s32 %s8, 2
    %s21 = sadd.s32 1, %s16
    %p22 = scmp.ge.s32.totalorder %s21, 1
    %s23 = scalar_select %p22, 0, %s21
    %s24 = sadd.s32 1, %s15
    %s25 = scalar_select %p22, %s24, %s15
    %p26 = scmp.ge.s32.totalorder %s25, 2
    %s27 = scalar_select %p26, 0, %s25
    %s28 = ssub.s32 %s15, %s27
    %p29 = scmp.eq.s32.totalorder %s28, 0
    %s31 = sadd.s32 %s30, 1
    %s32 = scalar_select %p29, %s30, %s31
    %p35 = pneg %p29
    %p36 = scmp.eq.s32.totalorder %s8, 1
    %p37 = por %p35, %p36
    %p38 = scmp.ne.s32.totalorder %s30, %s33
    %p39 = scmp.eq.s32.totalorder %s8, 0
    %p40 = por %p38, %p39
    %p41 = scmp.ne.s32.totalorder %s30, %s33
    %p42 = scmp.eq.s32.totalorder %s13, 1
    %p43 = por %p41, %p42
    %p44 = scmp.ne.s32.totalorder %s33, %s34
    %p45 = scmp.eq.s32.totalorder %s13, 0
    %p46 = por %p44, %p45
    %p47 = scmp.ne.s32.totalorder %s33, %s34
    %p48 = scmp.eq.s32.totalorder %s14, 1
    %p49 = por %p47, %p48
    %p51 = scmp.ne.s32.totalorder %s34, %s50
    %p52 = scmp.eq.s32.totalorder %s14, 0
    %p53 = por %p51, %p52
    %s54 = ssub.s32 %s15, %s27
    %s55 = ssub.s32 %s16, %s23
    %s56 = sor.u32 %s54, %s55
    %p57 = scmp.eq.s32.totalorder %s56, 0
    %s59 = sadd.s32 %s58, 1
    %s60 = scalar_select %p57, %s58, %s59
    %p63 = pneg %p57
    %p64 = scmp.eq.s32.totalorder %s8, 1
    %p65 = por %p63, %p64
    %p66 = scmp.ne.s32.totalorder %s58, %s61
    %p67 = scmp.eq.s32.totalorder %s8, 0
    %p68 = por %p66, %p67
    %p69 = scmp.ne.s32.totalorder %s58, %s61
    %p70 = scmp.eq.s32.totalorder %s13, 1
    %p71 = por %p69, %p70
    %p72 = scmp.ne.s32.totalorder %s61, %s62
    %p73 = scmp.eq.s32.totalorder %s13, 0
    %p74 = por %p72, %p73
    %p75 = scmp.ne.s32.totalorder %s61, %s62
    %p76 = scmp.eq.s32.totalorder %s14, 1
    %p77 = por %p75, %p76
    %p79 = scmp.ne.s32.totalorder %s62, %s78
    %p80 = scmp.eq.s32.totalorder %s14, 0
    %p81 = por %p79, %p80
    %s82 = ssub.s32 %s15, %s27
    %s83 = ssub.s32 %s16, %s23
    %s84 = sor.u32 %s82, %s83
    %p85 = scmp.eq.s32.totalorder %s84, 0
    %s87 = sadd.s32 %s86, 1
    %s88 = scalar_select %p85, %s86, %s87
    %p91 = pneg %p85
    %p92 = scmp.eq.s32.totalorder %s8, 1
    %p93 = por %p91, %p92
    %p94 = scmp.ne.s32.totalorder %s86, %s89
    %p95 = scmp.eq.s32.totalorder %s8, 0
    %p96 = por %p94, %p95
    %p97 = scmp.ne.s32.totalorder %s86, %s89
    %p98 = scmp.eq.s32.totalorder %s13, 1
    %p99 = por %p97, %p98
    %p100 = scmp.ne.s32.totalorder %s89, %s90
    %p101 = scmp.eq.s32.totalorder %s13, 0
    %p102 = por %p100, %p101
    %p103 = scmp.ne.s32.totalorder %s89, %s90
    %p104 = scmp.eq.s32.totalorder %s14, 1
    %p105 = por %p103, %p104
    %p107 = scmp.ne.s32.totalorder %s90, %s106
    %p108 = scmp.eq.s32.totalorder %s14, 0
    %p109 = por %p107, %p108
    %p110 = scmp.le.s32.totalorder 1, %s8
    %p111 = scmp.lt.s32.totalorder %s8, 3
    %p112 = pnand %p110, %p111
    %p113 = pneg %p112
    // Predicated region
    $region9: #{tpu_custom_call.1} parent=5 // pred_check
      _
    $region10: #{tpu_custom_call.1} parent=5 // pred_check_branch
      %115 = sbr.rel (%p112) target = $region12
    $region11: #{tpu_custom_call.1} parent=5 // pred_region
      %s116 = ssub.s32 %s8, 1
    $region12: #{tpu_custom_call.1} parent=5 // pred_fallthru
      _
    %p117 = scmp.lt.s32.totalorder %s8, 2
    // Predicated region
    $region13: #{tpu_custom_call.1} parent=5 // pred_check
      %p118 = pneg %p117
    $region14: #{tpu_custom_call.1} parent=5 // pred_check_branch
      %120 = sbr.rel (%p118) target = $region16
    $region15: #{tpu_custom_call.1} parent=5 // pred_region
      // Predicated region
      $region17: #{tpu_custom_call.1} parent=15 // pred_check
        %p121 = pneg %p40
      $region18: #{tpu_custom_call.1} parent=15 // pred_check_branch
        %123 = sbr.rel (%p121) target = $region20
      $region19: #{tpu_custom_call.1} parent=15 // pred_region
        %s124 = smul.u32 64, %s15
        %p125 = scmp.lt.s32.totalorder %s124, 127
        %s126 = scalar_select %p125, %s124, 127
        %s127 = smul.addr %s126, 2
        %s128 = smul.addr %s127, 8
        %s129 = scalar_lea.vmem %s0, %s128
        %s130 = smul.u32 64, %s15
      $region20: #{tpu_custom_call.1} parent=15 // pred_fallthru
        _
      // Predicated region
      $region21: #{tpu_custom_call.1} parent=15 // pred_check
        %p131 = pneg %p68
      $region22: #{tpu_custom_call.1} parent=15 // pred_check_branch
        %133 = sbr.rel (%p131) target = $region24
      $region23: #{tpu_custom_call.1} parent=15 // pred_region
        %s134 = smul.u32 64, %s15
        %p135 = scmp.lt.s32.totalorder %s134, 127
        %s136 = scalar_select %p135, %s134, 127
        %p137 = scmp.lt.s32.totalorder %s16, 0
        %s138 = scalar_select %p137, %s16, 0
        %s139 = sadd.s32 %s138, %s136
        %s140 = scalar_lea.vmem %s1, %s139
        %s141 = smul.u32 64, %s15
      $region24: #{tpu_custom_call.1} parent=15 // pred_fallthru
        _
    $region16: #{tpu_custom_call.1} parent=5 // pred_fallthru
      _
    %p142 = scmp.le.s32.totalorder 1, %s8
    %p143 = scmp.lt.s32.totalorder %s8, 3
    %p144 = pnand %p142, %p143
    %p145 = pneg %p144
    // Predicated region
    $region25: #{tpu_custom_call.1} parent=5 // pred_check
      _
    $region26: #{tpu_custom_call.1} parent=5 // pred_check_branch
      %147 = sbr.rel (%p144) target = $region28
    $region27: #{tpu_custom_call.1} parent=5 // pred_region
      %s148 = ssub.s32 %s8, 1
      %s149 = smul.u32 64, %s17
      %p150 = scmp.lt.s32.totalorder %s149, 127
      %s151 = scalar_select %p150, %s149, 127
      %s152 = smul.addr %s151, 2
      %s153 = smul.addr %s152, 8
      %s154 = scalar_lea.vmem %s0, %s153
      %p155 = pneg %p46
      %p156 = pneg %p43
      %s157 = smul.u32 64, %s17
      %p158 = scmp.lt.s32.totalorder %s157, 127
      %s159 = scalar_select %p158, %s157, 127
      %p160 = scmp.lt.s32.totalorder %s18, 0
      %s161 = scalar_select %p160, %s18, 0
      %s162 = sadd.s32 %s161, %s159
      %s163 = scalar_lea.vmem %s1, %s162
      %p164 = pneg %p74
      %p165 = pneg %p71
      %p166 = pneg %p102
      %p167 = pneg %p99
      %s168 = smul.u32 64, %s17
      %p169 = scmp.lt.s32.totalorder %s168, 127
      %s170 = scalar_select %p169, %s168, 127
      %p171 = scmp.lt.s32.totalorder %s18, 0
      %s172 = scalar_select %p171, %s18, 0
      %s173 = smul.addr %s170, 2
      %s174 = sadd.s32 %s172, %s173
      %s175 = smul.addr %s174, 8
      %s176 = scalar_lea.vmem %s2, %s175
      %s177 = smul.u32 64, %s17
      %p178 = scmp.lt.s32.totalorder %s177, 127
      %s179 = scalar_select %p178, %s177, 127
      %s180 = smul.addr %s179, 2
      %s181 = smul.addr %s180, 8
      %s182 = scalar_lea.vmem %s0, %s181
      %s183 = smul.u32 64, %s17
      %s184 = smul.u32 64, %s17
      %p185 = scmp.lt.s32.totalorder %s184, 127
      %s186 = scalar_select %p185, %s184, 127
      %p187 = scmp.lt.s32.totalorder %s18, 0
      %s188 = scalar_select %p187, %s18, 0
      %s189 = sadd.s32 %s188, %s186
      %s190 = scalar_lea.vmem %s1, %s189
      %s191 = smul.u32 64, %s17
      %s192 = smul.u32 64, %s17
      %p193 = scmp.lt.s32.totalorder %s192, 127
      %s194 = scalar_select %p193, %s192, 127
      %p195 = scmp.lt.s32.totalorder %s18, 0
      %s196 = scalar_select %p195, %s18, 0
      %s197 = smul.addr %s194, 2
      %s198 = sadd.s32 %s196, %s197
      %s199 = smul.addr %s198, 8
      %s200 = scalar_lea.vmem %s2, %s199
      %s201 = smul.u32 64, %s17
      %v202 = vld [vmem:[%s182] sm:$0xff]
      %v203 = vld [vmem:[%s182 + $0x8] sm:$0xff]
      %v204 = vld [vmem:[%s182 + $0x10] sm:$0xff]
      %v205 = vld [vmem:[%s182 + $0x18] sm:$0xff]
      %v206 = vld [vmem:[%s182 + $0x20] sm:$0xff]
      %v207 = vld [vmem:[%s182 + $0x28] sm:$0xff]
      %v208 = vld [vmem:[%s182 + $0x30] sm:$0xff]
      %v209 = vld [vmem:[%s182 + $0x38] sm:$0xff]
      %v210 = vld [vmem:[%s182 + $0x40] sm:$0xff]
      %v211 = vld [vmem:[%s182 + $0x48] sm:$0xff]
      %v212 = vld [vmem:[%s182 + $0x50] sm:$0xff]
      %v213 = vld [vmem:[%s182 + $0x58] sm:$0xff]
      %v214 = vld [vmem:[%s182 + $0x60] sm:$0xff]
      %v215 = vld [vmem:[%s182 + $0x68] sm:$0xff]
      %v216 = vld [vmem:[%s182 + $0x70] sm:$0xff]
      %v217 = vld [vmem:[%s182 + $0x78] sm:$0xff]
      %v218 = vld [vmem:[%s182 + $0x80] sm:$0xff]
      %v219 = vld [vmem:[%s182 + $0x88] sm:$0xff]
      %v220 = vld [vmem:[%s182 + $0x90] sm:$0xff]
      %v221 = vld [vmem:[%s182 + $0x98] sm:$0xff]
      %v222 = vld [vmem:[%s182 + $0xa0] sm:$0xff]
      %v223 = vld [vmem:[%s182 + $0xa8] sm:$0xff]
      %v224 = vld [vmem:[%s182 + $0xb0] sm:$0xff]
      %v225 = vld [vmem:[%s182 + $0xb8] sm:$0xff]
      %v226 = vld [vmem:[%s182 + $0xc0] sm:$0xff]
      %v227 = vld [vmem:[%s182 + $0xc8] sm:$0xff]
      %v228 = vld [vmem:[%s182 + $0xd0] sm:$0xff]
      %v229 = vld [vmem:[%s182 + $0xd8] sm:$0xff]
      %v230 = vld [vmem:[%s182 + $0xe0] sm:$0xff]
      %v231 = vld [vmem:[%s182 + $0xe8] sm:$0xff]
      %v232 = vld [vmem:[%s182 + $0xf0] sm:$0xff]
      %v233 = vld [vmem:[%s182 + $0xf8] sm:$0xff]
      %v234 = vld [vmem:[%s182 + $0x100] sm:$0xff]
      %v235 = vld [vmem:[%s182 + $0x108] sm:$0xff]
      %v236 = vld [vmem:[%s182 + $0x110] sm:$0xff]
      %v237 = vld [vmem:[%s182 + $0x118] sm:$0xff]
      %v238 = vld [vmem:[%s182 + $0x120] sm:$0xff]
      %v239 = vld [vmem:[%s182 + $0x128] sm:$0xff]
      %v240 = vld [vmem:[%s182 + $0x130] sm:$0xff]
      %v241 = vld [vmem:[%s182 + $0x138] sm:$0xff]
      %v242 = vld [vmem:[%s182 + $0x140] sm:$0xff]
      %v243 = vld [vmem:[%s182 + $0x148] sm:$0xff]
      %v244 = vld [vmem:[%s182 + $0x150] sm:$0xff]
      %v245 = vld [vmem:[%s182 + $0x158] sm:$0xff]
      %v246 = vld [vmem:[%s182 + $0x160] sm:$0xff]
      %v247 = vld [vmem:[%s182 + $0x168] sm:$0xff]
      %v248 = vld [vmem:[%s182 + $0x170] sm:$0xff]
      %v249 = vld [vmem:[%s182 + $0x178] sm:$0xff]
      %v250 = vld [vmem:[%s182 + $0x180] sm:$0xff]
      %v251 = vld [vmem:[%s182 + $0x188] sm:$0xff]
      %v252 = vld [vmem:[%s182 + $0x190] sm:$0xff]
      %v253 = vld [vmem:[%s182 + $0x198] sm:$0xff]
      %v254 = vld [vmem:[%s182 + $0x1a0] sm:$0xff]
      %v255 = vld [vmem:[%s182 + $0x1a8] sm:$0xff]
      %v256 = vld [vmem:[%s182 + $0x1b0] sm:$0xff]
      %v257 = vld [vmem:[%s182 + $0x1b8] sm:$0xff]
      %v258 = vld [vmem:[%s182 + $0x1c0] sm:$0xff]
      %v259 = vld [vmem:[%s182 + $0x1c8] sm:$0xff]
      %v260 = vld [vmem:[%s182 + $0x1d0] sm:$0xff]
      %v261 = vld [vmem:[%s182 + $0x1d8] sm:$0xff]
      %v262 = vld [vmem:[%s182 + $0x1e0] sm:$0xff]
      %v263 = vld [vmem:[%s182 + $0x1e8] sm:$0xff]
      %v264 = vld [vmem:[%s182 + $0x1f0] sm:$0xff]
      %v265 = vld [vmem:[%s182 + $0x1f8] sm:$0xff]
      %v266 = vld [vmem:[%s182 + $0x200] sm:$0xff]
      %v267 = vld [vmem:[%s182 + $0x208] sm:$0xff]
      %v268 = vld [vmem:[%s182 + $0x210] sm:$0xff]
      %v269 = vld [vmem:[%s182 + $0x218] sm:$0xff]
      %v270 = vld [vmem:[%s182 + $0x220] sm:$0xff]
      %v271 = vld [vmem:[%s182 + $0x228] sm:$0xff]
      %v272 = vld [vmem:[%s182 + $0x230] sm:$0xff]
      %v273 = vld [vmem:[%s182 + $0x238] sm:$0xff]
      %v274 = vld [vmem:[%s182 + $0x240] sm:$0xff]
      %v275 = vld [vmem:[%s182 + $0x248] sm:$0xff]
      %v276 = vld [vmem:[%s182 + $0x250] sm:$0xff]
      %v277 = vld [vmem:[%s182 + $0x258] sm:$0xff]
      %v278 = vld [vmem:[%s182 + $0x260] sm:$0xff]
      %v279 = vld [vmem:[%s182 + $0x268] sm:$0xff]
      %v280 = vld [vmem:[%s182 + $0x270] sm:$0xff]
      %v281 = vld [vmem:[%s182 + $0x278] sm:$0xff]
      %v282 = vld [vmem:[%s182 + $0x280] sm:$0xff]
      %v283 = vld [vmem:[%s182 + $0x288] sm:$0xff]
      %v284 = vld [vmem:[%s182 + $0x290] sm:$0xff]
      %v285 = vld [vmem:[%s182 + $0x298] sm:$0xff]
      %v286 = vld [vmem:[%s182 + $0x2a0] sm:$0xff]
      %v287 = vld [vmem:[%s182 + $0x2a8] sm:$0xff]
      %v288 = vld [vmem:[%s182 + $0x2b0] sm:$0xff]
      %v289 = vld [vmem:[%s182 + $0x2b8] sm:$0xff]
      %v290 = vld [vmem:[%s182 + $0x2c0] sm:$0xff]
      %v291 = vld [vmem:[%s182 + $0x2c8] sm:$0xff]
      %v292 = vld [vmem:[%s182 + $0x2d0] sm:$0xff]
      %v293 = vld [vmem:[%s182 + $0x2d8] sm:$0xff]
      %v294 = vld [vmem:[%s182 + $0x2e0] sm:$0xff]
      %v295 = vld [vmem:[%s182 + $0x2e8] sm:$0xff]
      %v296 = vld [vmem:[%s182 + $0x2f0] sm:$0xff]
      %v297 = vld [vmem:[%s182 + $0x2f8] sm:$0xff]
      %v298 = vld [vmem:[%s182 + $0x300] sm:$0xff]
      %v299 = vld [vmem:[%s182 + $0x308] sm:$0xff]
      %v300 = vld [vmem:[%s182 + $0x310] sm:$0xff]
      %v301 = vld [vmem:[%s182 + $0x318] sm:$0xff]
      %v302 = vld [vmem:[%s182 + $0x320] sm:$0xff]
      %v303 = vld [vmem:[%s182 + $0x328] sm:$0xff]
      %v304 = vld [vmem:[%s182 + $0x330] sm:$0xff]
      %v305 = vld [vmem:[%s182 + $0x338] sm:$0xff]
      %v306 = vld [vmem:[%s182 + $0x340] sm:$0xff]
      %v307 = vld [vmem:[%s182 + $0x348] sm:$0xff]
      %v308 = vld [vmem:[%s182 + $0x350] sm:$0xff]
      %v309 = vld [vmem:[%s182 + $0x358] sm:$0xff]
      %v310 = vld [vmem:[%s182 + $0x360] sm:$0xff]
      %v311 = vld [vmem:[%s182 + $0x368] sm:$0xff]
      %v312 = vld [vmem:[%s182 + $0x370] sm:$0xff]
      %v313 = vld [vmem:[%s182 + $0x378] sm:$0xff]
      %v314 = vld [vmem:[%s182 + $0x380] sm:$0xff]
      %v315 = vld [vmem:[%s182 + $0x388] sm:$0xff]
      %v316 = vld [vmem:[%s182 + $0x390] sm:$0xff]
      %v317 = vld [vmem:[%s182 + $0x398] sm:$0xff]
      %v318 = vld [vmem:[%s182 + $0x3a0] sm:$0xff]
      %v319 = vld [vmem:[%s182 + $0x3a8] sm:$0xff]
      %v320 = vld [vmem:[%s182 + $0x3b0] sm:$0xff]
      %v321 = vld [vmem:[%s182 + $0x3b8] sm:$0xff]
      %v322 = vld [vmem:[%s182 + $0x3c0] sm:$0xff]
      %v323 = vld [vmem:[%s182 + $0x3c8] sm:$0xff]
      %v324 = vld [vmem:[%s182 + $0x3d0] sm:$0xff]
      %v325 = vld [vmem:[%s182 + $0x3d8] sm:$0xff]
      %v326 = vld [vmem:[%s182 + $0x3e0] sm:$0xff]
      %v327 = vld [vmem:[%s182 + $0x3e8] sm:$0xff]
      %v328 = vld [vmem:[%s182 + $0x3f0] sm:$0xff]
      %v329 = vld [vmem:[%s182 + $0x3f8] sm:$0xff]
      %v330 = vld [vmem:[%s190] sm:$0x1]
      %v331 = vld [vmem:[%s190 + $0x1] sm:$0x1]
      %v332 = vld [vmem:[%s190 + $0x2] sm:$0x1]
      %v333 = vld [vmem:[%s190 + $0x3] sm:$0x1]
      %v334 = vld [vmem:[%s190 + $0x4] sm:$0x1]
      %v335 = vld [vmem:[%s190 + $0x5] sm:$0x1]
      %v336 = vld [vmem:[%s190 + $0x6] sm:$0x1]
      %v337 = vld [vmem:[%s190 + $0x7] sm:$0x1]
      %v338 = vld [vmem:[%s190 + $0x8] sm:$0x1]
      %v339 = vld [vmem:[%s190 + $0x9] sm:$0x1]
      %v340 = vld [vmem:[%s190 + $0xa] sm:$0x1]
      %v341 = vld [vmem:[%s190 + $0xb] sm:$0x1]
      %v342 = vld [vmem:[%s190 + $0xc] sm:$0x1]
      %v343 = vld [vmem:[%s190 + $0xd] sm:$0x1]
      %v344 = vld [vmem:[%s190 + $0xe] sm:$0x1]
      %v345 = vld [vmem:[%s190 + $0xf] sm:$0x1]
      %v346 = vld [vmem:[%s190 + $0x10] sm:$0x1]
      %v347 = vld [vmem:[%s190 + $0x11] sm:$0x1]
      %v348 = vld [vmem:[%s190 + $0x12] sm:$0x1]
      %v349 = vld [vmem:[%s190 + $0x13] sm:$0x1]
      %v350 = vld [vmem:[%s190 + $0x14] sm:$0x1]
      %v351 = vld [vmem:[%s190 + $0x15] sm:$0x1]
      %v352 = vld [vmem:[%s190 + $0x16] sm:$0x1]
      %v353 = vld [vmem:[%s190 + $0x17] sm:$0x1]
      %v354 = vld [vmem:[%s190 + $0x18] sm:$0x1]
      %v355 = vld [vmem:[%s190 + $0x19] sm:$0x1]
      %v356 = vld [vmem:[%s190 + $0x1a] sm:$0x1]
      %v357 = vld [vmem:[%s190 + $0x1b] sm:$0x1]
      %v358 = vld [vmem:[%s190 + $0x1c] sm:$0x1]
      %v359 = vld [vmem:[%s190 + $0x1d] sm:$0x1]
      %v360 = vld [vmem:[%s190 + $0x1e] sm:$0x1]
      %v361 = vld [vmem:[%s190 + $0x1f] sm:$0x1]
      %v362 = vld [vmem:[%s190 + $0x20] sm:$0x1]
      %v363 = vld [vmem:[%s190 + $0x21] sm:$0x1]
      %v364 = vld [vmem:[%s190 + $0x22] sm:$0x1]
      %v365 = vld [vmem:[%s190 + $0x23] sm:$0x1]
      %v366 = vld [vmem:[%s190 + $0x24] sm:$0x1]
      %v367 = vld [vmem:[%s190 + $0x25] sm:$0x1]
      %v368 = vld [vmem:[%s190 + $0x26] sm:$0x1]
      %v369 = vld [vmem:[%s190 + $0x27] sm:$0x1]
      %v370 = vld [vmem:[%s190 + $0x28] sm:$0x1]
      %v371 = vld [vmem:[%s190 + $0x29] sm:$0x1]
      %v372 = vld [vmem:[%s190 + $0x2a] sm:$0x1]
      %v373 = vld [vmem:[%s190 + $0x2b] sm:$0x1]
      %v374 = vld [vmem:[%s190 + $0x2c] sm:$0x1]
      %v375 = vld [vmem:[%s190 + $0x2d] sm:$0x1]
      %v376 = vld [vmem:[%s190 + $0x2e] sm:$0x1]
      %v377 = vld [vmem:[%s190 + $0x2f] sm:$0x1]
      %v378 = vld [vmem:[%s190 + $0x30] sm:$0x1]
      %v379 = vld [vmem:[%s190 + $0x31] sm:$0x1]
      %v380 = vld [vmem:[%s190 + $0x32] sm:$0x1]
      %v381 = vld [vmem:[%s190 + $0x33] sm:$0x1]
      %v382 = vld [vmem:[%s190 + $0x34] sm:$0x1]
      %v383 = vld [vmem:[%s190 + $0x35] sm:$0x1]
      %v384 = vld [vmem:[%s190 + $0x36] sm:$0x1]
      %v385 = vld [vmem:[%s190 + $0x37] sm:$0x1]
      %v386 = vld [vmem:[%s190 + $0x38] sm:$0x1]
      %v387 = vld [vmem:[%s190 + $0x39] sm:$0x1]
      %v388 = vld [vmem:[%s190 + $0x3a] sm:$0x1]
      %v389 = vld [vmem:[%s190 + $0x3b] sm:$0x1]
      %v390 = vld [vmem:[%s190 + $0x3c] sm:$0x1]
      %v391 = vld [vmem:[%s190 + $0x3d] sm:$0x1]
      %v392 = vld [vmem:[%s190 + $0x3e] sm:$0x1]
      %v393 = vld [vmem:[%s190 + $0x3f] sm:$0x1]
      %395 = vset.pattern.permute.xlu0 0
      %396 = vperm.xlu0 %395, %v202
      %v397 = vpop.permute.xlu0 %396
      %400 = vset.pattern.permute.xlu0 0
      %401 = vperm.xlu0 %400, %v203
      %v402 = vpop.permute.xlu0 %401
      %405 = vset.pattern.permute.xlu0 0
      %406 = vperm.xlu0 %405, %v204
      %v407 = vpop.permute.xlu0 %406
      %410 = vset.pattern.permute.xlu0 0
      %411 = vperm.xlu0 %410, %v205
      %v412 = vpop.permute.xlu0 %411
      %415 = vset.pattern.permute.xlu0 0
      %416 = vperm.xlu0 %415, %v206
      %v417 = vpop.permute.xlu0 %416
      %420 = vset.pattern.permute.xlu0 0
      %421 = vperm.xlu0 %420, %v207
      %v422 = vpop.permute.xlu0 %421
      %425 = vset.pattern.permute.xlu0 0
      %426 = vperm.xlu0 %425, %v208
      %v427 = vpop.permute.xlu0 %426
      %430 = vset.pattern.permute.xlu0 0
      %431 = vperm.xlu0 %430, %v209
      %v432 = vpop.permute.xlu0 %431
      %435 = vset.pattern.permute.xlu0 0
      %436 = vperm.xlu0 %435, %v210
      %v437 = vpop.permute.xlu0 %436
      %440 = vset.pattern.permute.xlu0 0
      %441 = vperm.xlu0 %440, %v211
      %v442 = vpop.permute.xlu0 %441
      %445 = vset.pattern.permute.xlu0 0
      %446 = vperm.xlu0 %445, %v212
      %v447 = vpop.permute.xlu0 %446
      %450 = vset.pattern.permute.xlu0 0
      %451 = vperm.xlu0 %450, %v213
      %v452 = vpop.permute.xlu0 %451
      %455 = vset.pattern.permute.xlu0 0
      %456 = vperm.xlu0 %455, %v214
      %v457 = vpop.permute.xlu0 %456
      %460 = vset.pattern.permute.xlu0 0
      %461 = vperm.xlu0 %460, %v215
      %v462 = vpop.permute.xlu0 %461
      %465 = vset.pattern.permute.xlu0 0
      %466 = vperm.xlu0 %465, %v216
      %v467 = vpop.permute.xlu0 %466
      %470 = vset.pattern.permute.xlu0 0
      %471 = vperm.xlu0 %470, %v217
      %v472 = vpop.permute.xlu0 %471
      %475 = vset.pattern.permute.xlu0 0
      %476 = vperm.xlu0 %475, %v218
      %v477 = vpop.permute.xlu0 %476
      %480 = vset.pattern.permute.xlu0 0
      %481 = vperm.xlu0 %480, %v219
      %v482 = vpop.permute.xlu0 %481
      %485 = vset.pattern.permute.xlu0 0
      %486 = vperm.xlu0 %485, %v220
      %v487 = vpop.permute.xlu0 %486
      %490 = vset.pattern.permute.xlu0 0
      %491 = vperm.xlu0 %490, %v221
      %v492 = vpop.permute.xlu0 %491
      %495 = vset.pattern.permute.xlu0 0
      %496 = vperm.xlu0 %495, %v222
      %v497 = vpop.permute.xlu0 %496
      %500 = vset.pattern.permute.xlu0 0
      %501 = vperm.xlu0 %500, %v223
      %v502 = vpop.permute.xlu0 %501
      %505 = vset.pattern.permute.xlu0 0
      %506 = vperm.xlu0 %505, %v224
      %v507 = vpop.permute.xlu0 %506
      %510 = vset.pattern.permute.xlu0 0
      %511 = vperm.xlu0 %510, %v225
      %v512 = vpop.permute.xlu0 %511
      %515 = vset.pattern.permute.xlu0 0
      %516 = vperm.xlu0 %515, %v226
      %v517 = vpop.permute.xlu0 %516
      %520 = vset.pattern.permute.xlu0 0
      %521 = vperm.xlu0 %520, %v227
      %v522 = vpop.permute.xlu0 %521
      %525 = vset.pattern.permute.xlu0 0
      %526 = vperm.xlu0 %525, %v228
      %v527 = vpop.permute.xlu0 %526
      %530 = vset.pattern.permute.xlu0 0
      %531 = vperm.xlu0 %530, %v229
      %v532 = vpop.permute.xlu0 %531
      %535 = vset.pattern.permute.xlu0 0
      %536 = vperm.xlu0 %535, %v230
      %v537 = vpop.permute.xlu0 %536
      %540 = vset.pattern.permute.xlu0 0
      %541 = vperm.xlu0 %540, %v231
      %v542 = vpop.permute.xlu0 %541
      %545 = vset.pattern.permute.xlu0 0
      %546 = vperm.xlu0 %545, %v232
      %v547 = vpop.permute.xlu0 %546
      %550 = vset.pattern.permute.xlu0 0
      %551 = vperm.xlu0 %550, %v233
      %v552 = vpop.permute.xlu0 %551
      %555 = vset.pattern.permute.xlu0 0
      %556 = vperm.xlu0 %555, %v234
      %v557 = vpop.permute.xlu0 %556
      %560 = vset.pattern.permute.xlu0 0
      %561 = vperm.xlu0 %560, %v235
      %v562 = vpop.permute.xlu0 %561
      %565 = vset.pattern.permute.xlu0 0
      %566 = vperm.xlu0 %565, %v236
      %v567 = vpop.permute.xlu0 %566
      %570 = vset.pattern.permute.xlu0 0
      %571 = vperm.xlu0 %570, %v237
      %v572 = vpop.permute.xlu0 %571
      %575 = vset.pattern.permute.xlu0 0
      %576 = vperm.xlu0 %575, %v238
      %v577 = vpop.permute.xlu0 %576
      %580 = vset.pattern.permute.xlu0 0
      %581 = vperm.xlu0 %580, %v239
      %v582 = vpop.permute.xlu0 %581
      %585 = vset.pattern.permute.xlu0 0
      %586 = vperm.xlu0 %585, %v240
      %v587 = vpop.permute.xlu0 %586
      %590 = vset.pattern.permute.xlu0 0
      %591 = vperm.xlu0 %590, %v241
      %v592 = vpop.permute.xlu0 %591
      %595 = vset.pattern.permute.xlu0 0
      %596 = vperm.xlu0 %595, %v242
      %v597 = vpop.permute.xlu0 %596
      %600 = vset.pattern.permute.xlu0 0
      %601 = vperm.xlu0 %600, %v243
      %v602 = vpop.permute.xlu0 %601
      %605 = vset.pattern.permute.xlu0 0
      %606 = vperm.xlu0 %605, %v244
      %v607 = vpop.permute.xlu0 %606
      %610 = vset.pattern.permute.xlu0 0
      %611 = vperm.xlu0 %610, %v245
      %v612 = vpop.permute.xlu0 %611
      %615 = vset.pattern.permute.xlu0 0
      %616 = vperm.xlu0 %615, %v246
      %v617 = vpop.permute.xlu0 %616
      %620 = vset.pattern.permute.xlu0 0
      %621 = vperm.xlu0 %620, %v247
      %v622 = vpop.permute.xlu0 %621
      %625 = vset.pattern.permute.xlu0 0
      %626 = vperm.xlu0 %625, %v248
      %v627 = vpop.permute.xlu0 %626
      %630 = vset.pattern.permute.xlu0 0
      %631 = vperm.xlu0 %630, %v249
      %v632 = vpop.permute.xlu0 %631
      %635 = vset.pattern.permute.xlu0 0
      %636 = vperm.xlu0 %635, %v250
      %v637 = vpop.permute.xlu0 %636
      %640 = vset.pattern.permute.xlu0 0
      %641 = vperm.xlu0 %640, %v251
      %v642 = vpop.permute.xlu0 %641
      %645 = vset.pattern.permute.xlu0 0
      %646 = vperm.xlu0 %645, %v252
      %v647 = vpop.permute.xlu0 %646
      %650 = vset.pattern.permute.xlu0 0
      %651 = vperm.xlu0 %650, %v253
      %v652 = vpop.permute.xlu0 %651
      %655 = vset.pattern.permute.xlu0 0
      %656 = vperm.xlu0 %655, %v254
      %v657 = vpop.permute.xlu0 %656
      %660 = vset.pattern.permute.xlu0 0
      %661 = vperm.xlu0 %660, %v255
      %v662 = vpop.permute.xlu0 %661
      %665 = vset.pattern.permute.xlu0 0
      %666 = vperm.xlu0 %665, %v256
      %v667 = vpop.permute.xlu0 %666
      %670 = vset.pattern.permute.xlu0 0
      %671 = vperm.xlu0 %670, %v257
      %v672 = vpop.permute.xlu0 %671
      %675 = vset.pattern.permute.xlu0 0
      %676 = vperm.xlu0 %675, %v258
      %v677 = vpop.permute.xlu0 %676
      %680 = vset.pattern.permute.xlu0 0
      %681 = vperm.xlu0 %680, %v259
      %v682 = vpop.permute.xlu0 %681
      %685 = vset.pattern.permute.xlu0 0
      %686 = vperm.xlu0 %685, %v260
      %v687 = vpop.permute.xlu0 %686
      %690 = vset.pattern.permute.xlu0 0
      %691 = vperm.xlu0 %690, %v261
      %v692 = vpop.permute.xlu0 %691
      %695 = vset.pattern.permute.xlu0 0
      %696 = vperm.xlu0 %695, %v262
      %v697 = vpop.permute.xlu0 %696
      %700 = vset.pattern.permute.xlu0 0
      %701 = vperm.xlu0 %700, %v263
      %v702 = vpop.permute.xlu0 %701
      %705 = vset.pattern.permute.xlu0 0
      %706 = vperm.xlu0 %705, %v264
      %v707 = vpop.permute.xlu0 %706
      %710 = vset.pattern.permute.xlu0 0
      %711 = vperm.xlu0 %710, %v265
      %v712 = vpop.permute.xlu0 %711
      %715 = vset.pattern.permute.xlu0 0
      %716 = vperm.xlu0 %715, %v266
      %v717 = vpop.permute.xlu0 %716
      %720 = vset.pattern.permute.xlu0 0
      %721 = vperm.xlu0 %720, %v267
      %v722 = vpop.permute.xlu0 %721
      %725 = vset.pattern.permute.xlu0 0
      %726 = vperm.xlu0 %725, %v268
      %v727 = vpop.permute.xlu0 %726
      %730 = vset.pattern.permute.xlu0 0
      %731 = vperm.xlu0 %730, %v269
      %v732 = vpop.permute.xlu0 %731
      %735 = vset.pattern.permute.xlu0 0
      %736 = vperm.xlu0 %735, %v270
      %v737 = vpop.permute.xlu0 %736
      %740 = vset.pattern.permute.xlu0 0
      %741 = vperm.xlu0 %740, %v271
      %v742 = vpop.permute.xlu0 %741
      %745 = vset.pattern.permute.xlu0 0
      %746 = vperm.xlu0 %745, %v272
      %v747 = vpop.permute.xlu0 %746
      %750 = vset.pattern.permute.xlu0 0
      %751 = vperm.xlu0 %750, %v273
      %v752 = vpop.permute.xlu0 %751
      %755 = vset.pattern.permute.xlu0 0
      %756 = vperm.xlu0 %755, %v274
      %v757 = vpop.permute.xlu0 %756
      %760 = vset.pattern.permute.xlu0 0
      %761 = vperm.xlu0 %760, %v275
      %v762 = vpop.permute.xlu0 %761
      %765 = vset.pattern.permute.xlu0 0
      %766 = vperm.xlu0 %765, %v276
      %v767 = vpop.permute.xlu0 %766
      %770 = vset.pattern.permute.xlu0 0
      %771 = vperm.xlu0 %770, %v277
      %v772 = vpop.permute.xlu0 %771
      %775 = vset.pattern.permute.xlu0 0
      %776 = vperm.xlu0 %775, %v278
      %v777 = vpop.permute.xlu0 %776
      %780 = vset.pattern.permute.xlu0 0
      %781 = vperm.xlu0 %780, %v279
      %v782 = vpop.permute.xlu0 %781
      %785 = vset.pattern.permute.xlu0 0
      %786 = vperm.xlu0 %785, %v280
      %v787 = vpop.permute.xlu0 %786
      %790 = vset.pattern.permute.xlu0 0
      %791 = vperm.xlu0 %790, %v281
      %v792 = vpop.permute.xlu0 %791
      %795 = vset.pattern.permute.xlu0 0
      %796 = vperm.xlu0 %795, %v282
      %v797 = vpop.permute.xlu0 %796
      %800 = vset.pattern.permute.xlu0 0
      %801 = vperm.xlu0 %800, %v283
      %v802 = vpop.permute.xlu0 %801
      %805 = vset.pattern.permute.xlu0 0
      %806 = vperm.xlu0 %805, %v284
      %v807 = vpop.permute.xlu0 %806
      %810 = vset.pattern.permute.xlu0 0
      %811 = vperm.xlu0 %810, %v285
      %v812 = vpop.permute.xlu0 %811
      %815 = vset.pattern.permute.xlu0 0
      %816 = vperm.xlu0 %815, %v286
      %v817 = vpop.permute.xlu0 %816
      %820 = vset.pattern.permute.xlu0 0
      %821 = vperm.xlu0 %820, %v287
      %v822 = vpop.permute.xlu0 %821
      %825 = vset.pattern.permute.xlu0 0
      %826 = vperm.xlu0 %825, %v288
      %v827 = vpop.permute.xlu0 %826
      %830 = vset.pattern.permute.xlu0 0
      %831 = vperm.xlu0 %830, %v289
      %v832 = vpop.permute.xlu0 %831
      %835 = vset.pattern.permute.xlu0 0
      %836 = vperm.xlu0 %835, %v290
      %v837 = vpop.permute.xlu0 %836
      %840 = vset.pattern.permute.xlu0 0
      %841 = vperm.xlu0 %840, %v291
      %v842 = vpop.permute.xlu0 %841
      %845 = vset.pattern.permute.xlu0 0
      %846 = vperm.xlu0 %845, %v292
      %v847 = vpop.permute.xlu0 %846
      %850 = vset.pattern.permute.xlu0 0
      %851 = vperm.xlu0 %850, %v293
      %v852 = vpop.permute.xlu0 %851
      %855 = vset.pattern.permute.xlu0 0
      %856 = vperm.xlu0 %855, %v294
      %v857 = vpop.permute.xlu0 %856
      %860 = vset.pattern.permute.xlu0 0
      %861 = vperm.xlu0 %860, %v295
      %v862 = vpop.permute.xlu0 %861
      %865 = vset.pattern.permute.xlu0 0
      %866 = vperm.xlu0 %865, %v296
      %v867 = vpop.permute.xlu0 %866
      %870 = vset.pattern.permute.xlu0 0
      %871 = vperm.xlu0 %870, %v297
      %v872 = vpop.permute.xlu0 %871
      %875 = vset.pattern.permute.xlu0 0
      %876 = vperm.xlu0 %875, %v298
      %v877 = vpop.permute.xlu0 %876
      %880 = vset.pattern.permute.xlu0 0
      %881 = vperm.xlu0 %880, %v299
      %v882 = vpop.permute.xlu0 %881
      %885 = vset.pattern.permute.xlu0 0
      %886 = vperm.xlu0 %885, %v300
      %v887 = vpop.permute.xlu0 %886
      %890 = vset.pattern.permute.xlu0 0
      %891 = vperm.xlu0 %890, %v301
      %v892 = vpop.permute.xlu0 %891
      %895 = vset.pattern.permute.xlu0 0
      %896 = vperm.xlu0 %895, %v302
      %v897 = vpop.permute.xlu0 %896
      %900 = vset.pattern.permute.xlu0 0
      %901 = vperm.xlu0 %900, %v303
      %v902 = vpop.permute.xlu0 %901
      %905 = vset.pattern.permute.xlu0 0
      %906 = vperm.xlu0 %905, %v304
      %v907 = vpop.permute.xlu0 %906
      %910 = vset.pattern.permute.xlu0 0
      %911 = vperm.xlu0 %910, %v305
      %v912 = vpop.permute.xlu0 %911
      %915 = vset.pattern.permute.xlu0 0
      %916 = vperm.xlu0 %915, %v306
      %v917 = vpop.permute.xlu0 %916
      %920 = vset.pattern.permute.xlu0 0
      %921 = vperm.xlu0 %920, %v307
      %v922 = vpop.permute.xlu0 %921
      %925 = vset.pattern.permute.xlu0 0
      %926 = vperm.xlu0 %925, %v308
      %v927 = vpop.permute.xlu0 %926
      %930 = vset.pattern.permute.xlu0 0
      %931 = vperm.xlu0 %930, %v309
      %v932 = vpop.permute.xlu0 %931
      %935 = vset.pattern.permute.xlu0 0
      %936 = vperm.xlu0 %935, %v310
      %v937 = vpop.permute.xlu0 %936
      %940 = vset.pattern.permute.xlu0 0
      %941 = vperm.xlu0 %940, %v311
      %v942 = vpop.permute.xlu0 %941
      %945 = vset.pattern.permute.xlu0 0
      %946 = vperm.xlu0 %945, %v312
      %v947 = vpop.permute.xlu0 %946
      %950 = vset.pattern.permute.xlu0 0
      %951 = vperm.xlu0 %950, %v313
      %v952 = vpop.permute.xlu0 %951
      %955 = vset.pattern.permute.xlu0 0
      %956 = vperm.xlu0 %955, %v314
      %v957 = vpop.permute.xlu0 %956
      %960 = vset.pattern.permute.xlu0 0
      %961 = vperm.xlu0 %960, %v315
      %v962 = vpop.permute.xlu0 %961
      %965 = vset.pattern.permute.xlu0 0
      %966 = vperm.xlu0 %965, %v316
      %v967 = vpop.permute.xlu0 %966
      %970 = vset.pattern.permute.xlu0 0
      %971 = vperm.xlu0 %970, %v317
      %v972 = vpop.permute.xlu0 %971
      %975 = vset.pattern.permute.xlu0 0
      %976 = vperm.xlu0 %975, %v318
      %v977 = vpop.permute.xlu0 %976
      %980 = vset.pattern.permute.xlu0 0
      %981 = vperm.xlu0 %980, %v319
      %v982 = vpop.permute.xlu0 %981
      %985 = vset.pattern.permute.xlu0 0
      %986 = vperm.xlu0 %985, %v320
      %v987 = vpop.permute.xlu0 %986
      %990 = vset.pattern.permute.xlu0 0
      %991 = vperm.xlu0 %990, %v321
      %v992 = vpop.permute.xlu0 %991
      %995 = vset.pattern.permute.xlu0 0
      %996 = vperm.xlu0 %995, %v322
      %v997 = vpop.permute.xlu0 %996
      %1000 = vset.pattern.permute.xlu0 0
      %1001 = vperm.xlu0 %1000, %v323
      %v1002 = vpop.permute.xlu0 %1001
      %1005 = vset.pattern.permute.xlu0 0
      %1006 = vperm.xlu0 %1005, %v324
      %v1007 = vpop.permute.xlu0 %1006
      %1010 = vset.pattern.permute.xlu0 0
      %1011 = vperm.xlu0 %1010, %v325
      %v1012 = vpop.permute.xlu0 %1011
      %1015 = vset.pattern.permute.xlu0 0
      %1016 = vperm.xlu0 %1015, %v326
      %v1017 = vpop.permute.xlu0 %1016
      %1020 = vset.pattern.permute.xlu0 0
      %1021 = vperm.xlu0 %1020, %v327
      %v1022 = vpop.permute.xlu0 %1021
      %1025 = vset.pattern.permute.xlu0 0
      %1026 = vperm.xlu0 %1025, %v328
      %v1027 = vpop.permute.xlu0 %1026
      %1030 = vset.pattern.permute.xlu0 0
      %1031 = vperm.xlu0 %1030, %v329
      %v1032 = vpop.permute.xlu0 %1031
      %v1098 = vlaneseq
      %v1099 = vshrl.u32 %v1098, 7
      %v1100 = vsub.s32 0, %v1099
      %v1101 = vrot.slane %v330, %v1100
      %v1102 = vlaneseq
      %v1103 = vshrl.u32 %v1102, 7
      %v1104 = vsub.s32 0, %v1103
      %v1105 = vrot.slane %v331, %v1104
      %v1106 = vlaneseq
      %v1107 = vshrl.u32 %v1106, 7
      %v1108 = vsub.s32 0, %v1107
      %v1109 = vrot.slane %v332, %v1108
      %v1110 = vlaneseq
      %v1111 = vshrl.u32 %v1110, 7
      %v1112 = vsub.s32 0, %v1111
      %v1113 = vrot.slane %v333, %v1112
      %v1114 = vlaneseq
      %v1115 = vshrl.u32 %v1114, 7
      %v1116 = vsub.s32 0, %v1115
      %v1117 = vrot.slane %v334, %v1116
      %v1118 = vlaneseq
      %v1119 = vshrl.u32 %v1118, 7
      %v1120 = vsub.s32 0, %v1119
      %v1121 = vrot.slane %v335, %v1120
      %v1122 = vlaneseq
      %v1123 = vshrl.u32 %v1122, 7
      %v1124 = vsub.s32 0, %v1123
      %v1125 = vrot.slane %v336, %v1124
      %v1126 = vlaneseq
      %v1127 = vshrl.u32 %v1126, 7
      %v1128 = vsub.s32 0, %v1127
      %v1129 = vrot.slane %v337, %v1128
      %v1130 = vlaneseq
      %v1131 = vshrl.u32 %v1130, 7
      %v1132 = vsub.s32 0, %v1131
      %v1133 = vrot.slane %v338, %v1132
      %v1134 = vlaneseq
      %v1135 = vshrl.u32 %v1134, 7
      %v1136 = vsub.s32 0, %v1135
      %v1137 = vrot.slane %v339, %v1136
      %v1138 = vlaneseq
      %v1139 = vshrl.u32 %v1138, 7
      %v1140 = vsub.s32 0, %v1139
      %v1141 = vrot.slane %v340, %v1140
      %v1142 = vlaneseq
      %v1143 = vshrl.u32 %v1142, 7
      %v1144 = vsub.s32 0, %v1143
      %v1145 = vrot.slane %v341, %v1144
      %v1146 = vlaneseq
      %v1147 = vshrl.u32 %v1146, 7
      %v1148 = vsub.s32 0, %v1147
      %v1149 = vrot.slane %v342, %v1148
      %v1150 = vlaneseq
      %v1151 = vshrl.u32 %v1150, 7
      %v1152 = vsub.s32 0, %v1151
      %v1153 = vrot.slane %v343, %v1152
      %v1154 = vlaneseq
      %v1155 = vshrl.u32 %v1154, 7
      %v1156 = vsub.s32 0, %v1155
      %v1157 = vrot.slane %v344, %v1156
      %v1158 = vlaneseq
      %v1159 = vshrl.u32 %v1158, 7
      %v1160 = vsub.s32 0, %v1159
      %v1161 = vrot.slane %v345, %v1160
      %v1162 = vlaneseq
      %v1163 = vshrl.u32 %v1162, 7
      %v1164 = vsub.s32 0, %v1163
      %v1165 = vrot.slane %v346, %v1164
      %v1166 = vlaneseq
      %v1167 = vshrl.u32 %v1166, 7
      %v1168 = vsub.s32 0, %v1167
      %v1169 = vrot.slane %v347, %v1168
      %v1170 = vlaneseq
      %v1171 = vshrl.u32 %v1170, 7
      %v1172 = vsub.s32 0, %v1171
      %v1173 = vrot.slane %v348, %v1172
      %v1174 = vlaneseq
      %v1175 = vshrl.u32 %v1174, 7
      %v1176 = vsub.s32 0, %v1175
      %v1177 = vrot.slane %v349, %v1176
      %v1178 = vlaneseq
      %v1179 = vshrl.u32 %v1178, 7
      %v1180 = vsub.s32 0, %v1179
      %v1181 = vrot.slane %v350, %v1180
      %v1182 = vlaneseq
      %v1183 = vshrl.u32 %v1182, 7
      %v1184 = vsub.s32 0, %v1183
      %v1185 = vrot.slane %v351, %v1184
      %v1186 = vlaneseq
      %v1187 = vshrl.u32 %v1186, 7
      %v1188 = vsub.s32 0, %v1187
      %v1189 = vrot.slane %v352, %v1188
      %v1190 = vlaneseq
      %v1191 = vshrl.u32 %v1190, 7
      %v1192 = vsub.s32 0, %v1191
      %v1193 = vrot.slane %v353, %v1192
      %v1194 = vlaneseq
      %v1195 = vshrl.u32 %v1194, 7
      %v1196 = vsub.s32 0, %v1195
      %v1197 = vrot.slane %v354, %v1196
      %v1198 = vlaneseq
      %v1199 = vshrl.u32 %v1198, 7
      %v1200 = vsub.s32 0, %v1199
      %v1201 = vrot.slane %v355, %v1200
      %v1202 = vlaneseq
      %v1203 = vshrl.u32 %v1202, 7
      %v1204 = vsub.s32 0, %v1203
      %v1205 = vrot.slane %v356, %v1204
      %v1206 = vlaneseq
      %v1207 = vshrl.u32 %v1206, 7
      %v1208 = vsub.s32 0, %v1207
      %v1209 = vrot.slane %v357, %v1208
      %v1210 = vlaneseq
      %v1211 = vshrl.u32 %v1210, 7
      %v1212 = vsub.s32 0, %v1211
      %v1213 = vrot.slane %v358, %v1212
      %v1214 = vlaneseq
      %v1215 = vshrl.u32 %v1214, 7
      %v1216 = vsub.s32 0, %v1215
      %v1217 = vrot.slane %v359, %v1216
      %v1218 = vlaneseq
      %v1219 = vshrl.u32 %v1218, 7
      %v1220 = vsub.s32 0, %v1219
      %v1221 = vrot.slane %v360, %v1220
      %v1222 = vlaneseq
      %v1223 = vshrl.u32 %v1222, 7
      %v1224 = vsub.s32 0, %v1223
      %v1225 = vrot.slane %v361, %v1224
      %v1226 = vlaneseq
      %v1227 = vshrl.u32 %v1226, 7
      %v1228 = vsub.s32 0, %v1227
      %v1229 = vrot.slane %v362, %v1228
      %v1230 = vlaneseq
      %v1231 = vshrl.u32 %v1230, 7
      %v1232 = vsub.s32 0, %v1231
      %v1233 = vrot.slane %v363, %v1232
      %v1234 = vlaneseq
      %v1235 = vshrl.u32 %v1234, 7
      %v1236 = vsub.s32 0, %v1235
      %v1237 = vrot.slane %v364, %v1236
      %v1238 = vlaneseq
      %v1239 = vshrl.u32 %v1238, 7
      %v1240 = vsub.s32 0, %v1239
      %v1241 = vrot.slane %v365, %v1240
      %v1242 = vlaneseq
      %v1243 = vshrl.u32 %v1242, 7
      %v1244 = vsub.s32 0, %v1243
      %v1245 = vrot.slane %v366, %v1244
      %v1246 = vlaneseq
      %v1247 = vshrl.u32 %v1246, 7
      %v1248 = vsub.s32 0, %v1247
      %v1249 = vrot.slane %v367, %v1248
      %v1250 = vlaneseq
      %v1251 = vshrl.u32 %v1250, 7
      %v1252 = vsub.s32 0, %v1251
      %v1253 = vrot.slane %v368, %v1252
      %v1254 = vlaneseq
      %v1255 = vshrl.u32 %v1254, 7
      %v1256 = vsub.s32 0, %v1255
      %v1257 = vrot.slane %v369, %v1256
      %v1258 = vlaneseq
      %v1259 = vshrl.u32 %v1258, 7
      %v1260 = vsub.s32 0, %v1259
      %v1261 = vrot.slane %v370, %v1260
      %v1262 = vlaneseq
      %v1263 = vshrl.u32 %v1262, 7
      %v1264 = vsub.s32 0, %v1263
      %v1265 = vrot.slane %v371, %v1264
      %v1266 = vlaneseq
      %v1267 = vshrl.u32 %v1266, 7
      %v1268 = vsub.s32 0, %v1267
      %v1269 = vrot.slane %v372, %v1268
      %v1270 = vlaneseq
      %v1271 = vshrl.u32 %v1270, 7
      %v1272 = vsub.s32 0, %v1271
      %v1273 = vrot.slane %v373, %v1272
      %v1274 = vlaneseq
      %v1275 = vshrl.u32 %v1274, 7
      %v1276 = vsub.s32 0, %v1275
      %v1277 = vrot.slane %v374, %v1276
      %v1278 = vlaneseq
      %v1279 = vshrl.u32 %v1278, 7
      %v1280 = vsub.s32 0, %v1279
      %v1281 = vrot.slane %v375, %v1280
      %v1282 = vlaneseq
      %v1283 = vshrl.u32 %v1282, 7
      %v1284 = vsub.s32 0, %v1283
      %v1285 = vrot.slane %v376, %v1284
      %v1286 = vlaneseq
      %v1287 = vshrl.u32 %v1286, 7
      %v1288 = vsub.s32 0, %v1287
      %v1289 = vrot.slane %v377, %v1288
      %v1290 = vlaneseq
      %v1291 = vshrl.u32 %v1290, 7
      %v1292 = vsub.s32 0, %v1291
      %v1293 = vrot.slane %v378, %v1292
      %v1294 = vlaneseq
      %v1295 = vshrl.u32 %v1294, 7
      %v1296 = vsub.s32 0, %v1295
      %v1297 = vrot.slane %v379, %v1296
      %v1298 = vlaneseq
      %v1299 = vshrl.u32 %v1298, 7
      %v1300 = vsub.s32 0, %v1299
      %v1301 = vrot.slane %v380, %v1300
      %v1302 = vlaneseq
      %v1303 = vshrl.u32 %v1302, 7
      %v1304 = vsub.s32 0, %v1303
      %v1305 = vrot.slane %v381, %v1304
      %v1306 = vlaneseq
      %v1307 = vshrl.u32 %v1306, 7
      %v1308 = vsub.s32 0, %v1307
      %v1309 = vrot.slane %v382, %v1308
      %v1310 = vlaneseq
      %v1311 = vshrl.u32 %v1310, 7
      %v1312 = vsub.s32 0, %v1311
      %v1313 = vrot.slane %v383, %v1312
      %v1314 = vlaneseq
      %v1315 = vshrl.u32 %v1314, 7
      %v1316 = vsub.s32 0, %v1315
      %v1317 = vrot.slane %v384, %v1316
      %v1318 = vlaneseq
      %v1319 = vshrl.u32 %v1318, 7
      %v1320 = vsub.s32 0, %v1319
      %v1321 = vrot.slane %v385, %v1320
      %v1322 = vlaneseq
      %v1323 = vshrl.u32 %v1322, 7
      %v1324 = vsub.s32 0, %v1323
      %v1325 = vrot.slane %v386, %v1324
      %v1326 = vlaneseq
      %v1327 = vshrl.u32 %v1326, 7
      %v1328 = vsub.s32 0, %v1327
      %v1329 = vrot.slane %v387, %v1328
      %v1330 = vlaneseq
      %v1331 = vshrl.u32 %v1330, 7
      %v1332 = vsub.s32 0, %v1331
      %v1333 = vrot.slane %v388, %v1332
      %v1334 = vlaneseq
      %v1335 = vshrl.u32 %v1334, 7
      %v1336 = vsub.s32 0, %v1335
      %v1337 = vrot.slane %v389, %v1336
      %v1338 = vlaneseq
      %v1339 = vshrl.u32 %v1338, 7
      %v1340 = vsub.s32 0, %v1339
      %v1341 = vrot.slane %v390, %v1340
      %v1342 = vlaneseq
      %v1343 = vshrl.u32 %v1342, 7
      %v1344 = vsub.s32 0, %v1343
      %v1345 = vrot.slane %v391, %v1344
      %v1346 = vlaneseq
      %v1347 = vshrl.u32 %v1346, 7
      %v1348 = vsub.s32 0, %v1347
      %v1349 = vrot.slane %v392, %v1348
      %v1350 = vlaneseq
      %v1351 = vshrl.u32 %v1350, 7
      %v1352 = vsub.s32 0, %v1351
      %v1353 = vrot.slane %v393, %v1352
      %v1418 = vadd.f32 %v397, %v1101
      %v1419 = vadd.f32 %v402, %v1101
      %v1420 = vadd.f32 %v407, %v1105
      %v1421 = vadd.f32 %v412, %v1105
      %v1422 = vadd.f32 %v417, %v1109
      %v1423 = vadd.f32 %v422, %v1109
      %v1424 = vadd.f32 %v427, %v1113
      %v1425 = vadd.f32 %v432, %v1113
      %v1426 = vadd.f32 %v437, %v1117
      %v1427 = vadd.f32 %v442, %v1117
      %v1428 = vadd.f32 %v447, %v1121
      %v1429 = vadd.f32 %v452, %v1121
      %v1430 = vadd.f32 %v457, %v1125
      %v1431 = vadd.f32 %v462, %v1125
      %v1432 = vadd.f32 %v467, %v1129
      %v1433 = vadd.f32 %v472, %v1129
      %v1434 = vadd.f32 %v477, %v1133
      %v1435 = vadd.f32 %v482, %v1133
      %v1436 = vadd.f32 %v487, %v1137
      %v1437 = vadd.f32 %v492, %v1137
      %v1438 = vadd.f32 %v497, %v1141
      %v1439 = vadd.f32 %v502, %v1141
      %v1440 = vadd.f32 %v507, %v1145
      %v1441 = vadd.f32 %v512, %v1145
      %v1442 = vadd.f32 %v517, %v1149
      %v1443 = vadd.f32 %v522, %v1149
      %v1444 = vadd.f32 %v527, %v1153
      %v1445 = vadd.f32 %v532, %v1153
      %v1446 = vadd.f32 %v537, %v1157
      %v1447 = vadd.f32 %v542, %v1157
      %v1448 = vadd.f32 %v547, %v1161
      %v1449 = vadd.f32 %v552, %v1161
      %v1450 = vadd.f32 %v557, %v1165
      %v1451 = vadd.f32 %v562, %v1165
      %v1452 = vadd.f32 %v567, %v1169
      %v1453 = vadd.f32 %v572, %v1169
      %v1454 = vadd.f32 %v577, %v1173
      %v1455 = vadd.f32 %v582, %v1173
      %v1456 = vadd.f32 %v587, %v1177
      %v1457 = vadd.f32 %v592, %v1177
      %v1458 = vadd.f32 %v597, %v1181
      %v1459 = vadd.f32 %v602, %v1181
      %v1460 = vadd.f32 %v607, %v1185
      %v1461 = vadd.f32 %v612, %v1185
      %v1462 = vadd.f32 %v617, %v1189
      %v1463 = vadd.f32 %v622, %v1189
      %v1464 = vadd.f32 %v627, %v1193
      %v1465 = vadd.f32 %v632, %v1193
      %v1466 = vadd.f32 %v637, %v1197
      %v1467 = vadd.f32 %v642, %v1197
      %v1468 = vadd.f32 %v647, %v1201
      %v1469 = vadd.f32 %v652, %v1201
      %v1470 = vadd.f32 %v657, %v1205
      %v1471 = vadd.f32 %v662, %v1205
      %v1472 = vadd.f32 %v667, %v1209
      %v1473 = vadd.f32 %v672, %v1209
      %v1474 = vadd.f32 %v677, %v1213
      %v1475 = vadd.f32 %v682, %v1213
      %v1476 = vadd.f32 %v687, %v1217
      %v1477 = vadd.f32 %v692, %v1217
      %v1478 = vadd.f32 %v697, %v1221
      %v1479 = vadd.f32 %v702, %v1221
      %v1480 = vadd.f32 %v707, %v1225
      %v1481 = vadd.f32 %v712, %v1225
      %v1482 = vadd.f32 %v717, %v1229
      %v1483 = vadd.f32 %v722, %v1229
      %v1484 = vadd.f32 %v727, %v1233
      %v1485 = vadd.f32 %v732, %v1233
      %v1486 = vadd.f32 %v737, %v1237
      %v1487 = vadd.f32 %v742, %v1237
      %v1488 = vadd.f32 %v747, %v1241
      %v1489 = vadd.f32 %v752, %v1241
      %v1490 = vadd.f32 %v757, %v1245
      %v1491 = vadd.f32 %v762, %v1245
      %v1492 = vadd.f32 %v767, %v1249
      %v1493 = vadd.f32 %v772, %v1249
      %v1494 = vadd.f32 %v777, %v1253
      %v1495 = vadd.f32 %v782, %v1253
      %v1496 = vadd.f32 %v787, %v1257
      %v1497 = vadd.f32 %v792, %v1257
      %v1498 = vadd.f32 %v797, %v1261
      %v1499 = vadd.f32 %v802, %v1261
      %v1500 = vadd.f32 %v807, %v1265
      %v1501 = vadd.f32 %v812, %v1265
      %v1502 = vadd.f32 %v817, %v1269
      %v1503 = vadd.f32 %v822, %v1269
      %v1504 = vadd.f32 %v827, %v1273
      %v1505 = vadd.f32 %v832, %v1273
      %v1506 = vadd.f32 %v837, %v1277
      %v1507 = vadd.f32 %v842, %v1277
      %v1508 = vadd.f32 %v847, %v1281
      %v1509 = vadd.f32 %v852, %v1281
      %v1510 = vadd.f32 %v857, %v1285
      %v1511 = vadd.f32 %v862, %v1285
      %v1512 = vadd.f32 %v867, %v1289
      %v1513 = vadd.f32 %v872, %v1289
      %v1514 = vadd.f32 %v877, %v1293
      %v1515 = vadd.f32 %v882, %v1293
      %v1516 = vadd.f32 %v887, %v1297
      %v1517 = vadd.f32 %v892, %v1297
      %v1518 = vadd.f32 %v897, %v1301
      %v1519 = vadd.f32 %v902, %v1301
      %v1520 = vadd.f32 %v907, %v1305
      %v1521 = vadd.f32 %v912, %v1305
      %v1522 = vadd.f32 %v917, %v1309
      %v1523 = vadd.f32 %v922, %v1309
      %v1524 = vadd.f32 %v927, %v1313
      %v1525 = vadd.f32 %v932, %v1313
      %v1526 = vadd.f32 %v937, %v1317
      %v1527 = vadd.f32 %v942, %v1317
      %v1528 = vadd.f32 %v947, %v1321
      %v1529 = vadd.f32 %v952, %v1321
      %v1530 = vadd.f32 %v957, %v1325
      %v1531 = vadd.f32 %v962, %v1325
      %v1532 = vadd.f32 %v967, %v1329
      %v1533 = vadd.f32 %v972, %v1329
      %v1534 = vadd.f32 %v977, %v1333
      %v1535 = vadd.f32 %v982, %v1333
      %v1536 = vadd.f32 %v987, %v1337
      %v1537 = vadd.f32 %v992, %v1337
      %v1538 = vadd.f32 %v997, %v1341
      %v1539 = vadd.f32 %v1002, %v1341
      %v1540 = vadd.f32 %v1007, %v1345
      %v1541 = vadd.f32 %v1012, %v1345
      %v1542 = vadd.f32 %v1017, %v1349
      %v1543 = vadd.f32 %v1022, %v1349
      %v1544 = vadd.f32 %v1027, %v1353
      %v1545 = vadd.f32 %v1032, %v1353
      %vm1546 = vcmask 130048
      %1547 = vst.msk [vmem:[%s200] sm:$0xff] %vm1546, %v1418
      %1548 = vst.msk [vmem:[%s200 + $0x8] sm:$0xff] %vm1546, %v1419
      %1549 = vst.msk [vmem:[%s200 + $0x10] sm:$0xff] %vm1546, %v1420
      %1550 = vst.msk [vmem:[%s200 + $0x18] sm:$0xff] %vm1546, %v1421
      %1551 = vst.msk [vmem:[%s200 + $0x20] sm:$0xff] %vm1546, %v1422
      %1552 = vst.msk [vmem:[%s200 + $0x28] sm:$0xff] %vm1546, %v1423
      %1553 = vst.msk [vmem:[%s200 + $0x30] sm:$0xff] %vm1546, %v1424
      %1554 = vst.msk [vmem:[%s200 + $0x38] sm:$0xff] %vm1546, %v1425
      %1555 = vst.msk [vmem:[%s200 + $0x40] sm:$0xff] %vm1546, %v1426
      %1556 = vst.msk [vmem:[%s200 + $0x48] sm:$0xff] %vm1546, %v1427
      %1557 = vst.msk [vmem:[%s200 + $0x50] sm:$0xff] %vm1546, %v1428
      %1558 = vst.msk [vmem:[%s200 + $0x58] sm:$0xff] %vm1546, %v1429
      %1559 = vst.msk [vmem:[%s200 + $0x60] sm:$0xff] %vm1546, %v1430
      %1560 = vst.msk [vmem:[%s200 + $0x68] sm:$0xff] %vm1546, %v1431
      %1561 = vst.msk [vmem:[%s200 + $0x70] sm:$0xff] %vm1546, %v1432
      %1562 = vst.msk [vmem:[%s200 + $0x78] sm:$0xff] %vm1546, %v1433
      %1563 = vst.msk [vmem:[%s200 + $0x80] sm:$0xff] %vm1546, %v1434
      %1564 = vst.msk [vmem:[%s200 + $0x88] sm:$0xff] %vm1546, %v1435
      %1565 = vst.msk [vmem:[%s200 + $0x90] sm:$0xff] %vm1546, %v1436
      %1566 = vst.msk [vmem:[%s200 + $0x98] sm:$0xff] %vm1546, %v1437
      %1567 = vst.msk [vmem:[%s200 + $0xa0] sm:$0xff] %vm1546, %v1438
      %1568 = vst.msk [vmem:[%s200 + $0xa8] sm:$0xff] %vm1546, %v1439
      %1569 = vst.msk [vmem:[%s200 + $0xb0] sm:$0xff] %vm1546, %v1440
      %1570 = vst.msk [vmem:[%s200 + $0xb8] sm:$0xff] %vm1546, %v1441
      %1571 = vst.msk [vmem:[%s200 + $0xc0] sm:$0xff] %vm1546, %v1442
      %1572 = vst.msk [vmem:[%s200 + $0xc8] sm:$0xff] %vm1546, %v1443
      %1573 = vst.msk [vmem:[%s200 + $0xd0] sm:$0xff] %vm1546, %v1444
      %1574 = vst.msk [vmem:[%s200 + $0xd8] sm:$0xff] %vm1546, %v1445
      %1575 = vst.msk [vmem:[%s200 + $0xe0] sm:$0xff] %vm1546, %v1446
      %1576 = vst.msk [vmem:[%s200 + $0xe8] sm:$0xff] %vm1546, %v1447
      %1577 = vst.msk [vmem:[%s200 + $0xf0] sm:$0xff] %vm1546, %v1448
      %1578 = vst.msk [vmem:[%s200 + $0xf8] sm:$0xff] %vm1546, %v1449
      %1579 = vst.msk [vmem:[%s200 + $0x100] sm:$0xff] %vm1546, %v1450
      %1580 = vst.msk [vmem:[%s200 + $0x108] sm:$0xff] %vm1546, %v1451
      %1581 = vst.msk [vmem:[%s200 + $0x110] sm:$0xff] %vm1546, %v1452
      %1582 = vst.msk [vmem:[%s200 + $0x118] sm:$0xff] %vm1546, %v1453
      %1583 = vst.msk [vmem:[%s200 + $0x120] sm:$0xff] %vm1546, %v1454
      %1584 = vst.msk [vmem:[%s200 + $0x128] sm:$0xff] %vm1546, %v1455
      %1585 = vst.msk [vmem:[%s200 + $0x130] sm:$0xff] %vm1546, %v1456
      %1586 = vst.msk [vmem:[%s200 + $0x138] sm:$0xff] %vm1546, %v1457
      %1587 = vst.msk [vmem:[%s200 + $0x140] sm:$0xff] %vm1546, %v1458
      %1588 = vst.msk [vmem:[%s200 + $0x148] sm:$0xff] %vm1546, %v1459
      %1589 = vst.msk [vmem:[%s200 + $0x150] sm:$0xff] %vm1546, %v1460
      %1590 = vst.msk [vmem:[%s200 + $0x158] sm:$0xff] %vm1546, %v1461
      %1591 = vst.msk [vmem:[%s200 + $0x160] sm:$0xff] %vm1546, %v1462
      %1592 = vst.msk [vmem:[%s200 + $0x168] sm:$0xff] %vm1546, %v1463
      %1593 = vst.msk [vmem:[%s200 + $0x170] sm:$0xff] %vm1546, %v1464
      %1594 = vst.msk [vmem:[%s200 + $0x178] sm:$0xff] %vm1546, %v1465
      %1595 = vst.msk [vmem:[%s200 + $0x180] sm:$0xff] %vm1546, %v1466
      %1596 = vst.msk [vmem:[%s200 + $0x188] sm:$0xff] %vm1546, %v1467
      %1597 = vst.msk [vmem:[%s200 + $0x190] sm:$0xff] %vm1546, %v1468
      %1598 = vst.msk [vmem:[%s200 + $0x198] sm:$0xff] %vm1546, %v1469
      %1599 = vst.msk [vmem:[%s200 + $0x1a0] sm:$0xff] %vm1546, %v1470
      %1600 = vst.msk [vmem:[%s200 + $0x1a8] sm:$0xff] %vm1546, %v1471
      %1601 = vst.msk [vmem:[%s200 + $0x1b0] sm:$0xff] %vm1546, %v1472
      %1602 = vst.msk [vmem:[%s200 + $0x1b8] sm:$0xff] %vm1546, %v1473
      %1603 = vst.msk [vmem:[%s200 + $0x1c0] sm:$0xff] %vm1546, %v1474
      %1604 = vst.msk [vmem:[%s200 + $0x1c8] sm:$0xff] %vm1546, %v1475
      %1605 = vst.msk [vmem:[%s200 + $0x1d0] sm:$0xff] %vm1546, %v1476
      %1606 = vst.msk [vmem:[%s200 + $0x1d8] sm:$0xff] %vm1546, %v1477
      %1607 = vst.msk [vmem:[%s200 + $0x1e0] sm:$0xff] %vm1546, %v1478
      %1608 = vst.msk [vmem:[%s200 + $0x1e8] sm:$0xff] %vm1546, %v1479
      %1609 = vst.msk [vmem:[%s200 + $0x1f0] sm:$0xff] %vm1546, %v1480
      %1610 = vst.msk [vmem:[%s200 + $0x1f8] sm:$0xff] %vm1546, %v1481
      %1611 = vst.msk [vmem:[%s200 + $0x200] sm:$0xff] %vm1546, %v1482
      %1612 = vst.msk [vmem:[%s200 + $0x208] sm:$0xff] %vm1546, %v1483
      %1613 = vst.msk [vmem:[%s200 + $0x210] sm:$0xff] %vm1546, %v1484
      %1614 = vst.msk [vmem:[%s200 + $0x218] sm:$0xff] %vm1546, %v1485
      %1615 = vst.msk [vmem:[%s200 + $0x220] sm:$0xff] %vm1546, %v1486
      %1616 = vst.msk [vmem:[%s200 + $0x228] sm:$0xff] %vm1546, %v1487
      %1617 = vst.msk [vmem:[%s200 + $0x230] sm:$0xff] %vm1546, %v1488
      %1618 = vst.msk [vmem:[%s200 + $0x238] sm:$0xff] %vm1546, %v1489
      %1619 = vst.msk [vmem:[%s200 + $0x240] sm:$0xff] %vm1546, %v1490
      %1620 = vst.msk [vmem:[%s200 + $0x248] sm:$0xff] %vm1546, %v1491
      %1621 = vst.msk [vmem:[%s200 + $0x250] sm:$0xff] %vm1546, %v1492
      %1622 = vst.msk [vmem:[%s200 + $0x258] sm:$0xff] %vm1546, %v1493
      %1623 = vst.msk [vmem:[%s200 + $0x260] sm:$0xff] %vm1546, %v1494
      %1624 = vst.msk [vmem:[%s200 + $0x268] sm:$0xff] %vm1546, %v1495
      %1625 = vst.msk [vmem:[%s200 + $0x270] sm:$0xff] %vm1546, %v1496
      %1626 = vst.msk [vmem:[%s200 + $0x278] sm:$0xff] %vm1546, %v1497
      %1627 = vst.msk [vmem:[%s200 + $0x280] sm:$0xff] %vm1546, %v1498
      %1628 = vst.msk [vmem:[%s200 + $0x288] sm:$0xff] %vm1546, %v1499
      %1629 = vst.msk [vmem:[%s200 + $0x290] sm:$0xff] %vm1546, %v1500
      %1630 = vst.msk [vmem:[%s200 + $0x298] sm:$0xff] %vm1546, %v1501
      %1631 = vst.msk [vmem:[%s200 + $0x2a0] sm:$0xff] %vm1546, %v1502
      %1632 = vst.msk [vmem:[%s200 + $0x2a8] sm:$0xff] %vm1546, %v1503
      %1633 = vst.msk [vmem:[%s200 + $0x2b0] sm:$0xff] %vm1546, %v1504
      %1634 = vst.msk [vmem:[%s200 + $0x2b8] sm:$0xff] %vm1546, %v1505
      %1635 = vst.msk [vmem:[%s200 + $0x2c0] sm:$0xff] %vm1546, %v1506
      %1636 = vst.msk [vmem:[%s200 + $0x2c8] sm:$0xff] %vm1546, %v1507
      %1637 = vst.msk [vmem:[%s200 + $0x2d0] sm:$0xff] %vm1546, %v1508
      %1638 = vst.msk [vmem:[%s200 + $0x2d8] sm:$0xff] %vm1546, %v1509
      %1639 = vst.msk [vmem:[%s200 + $0x2e0] sm:$0xff] %vm1546, %v1510
      %1640 = vst.msk [vmem:[%s200 + $0x2e8] sm:$0xff] %vm1546, %v1511
      %1641 = vst.msk [vmem:[%s200 + $0x2f0] sm:$0xff] %vm1546, %v1512
      %1642 = vst.msk [vmem:[%s200 + $0x2f8] sm:$0xff] %vm1546, %v1513
      %1643 = vst.msk [vmem:[%s200 + $0x300] sm:$0xff] %vm1546, %v1514
      %1644 = vst.msk [vmem:[%s200 + $0x308] sm:$0xff] %vm1546, %v1515
      %1645 = vst.msk [vmem:[%s200 + $0x310] sm:$0xff] %vm1546, %v1516
      %1646 = vst.msk [vmem:[%s200 + $0x318] sm:$0xff] %vm1546, %v1517
      %1647 = vst.msk [vmem:[%s200 + $0x320] sm:$0xff] %vm1546, %v1518
      %1648 = vst.msk [vmem:[%s200 + $0x328] sm:$0xff] %vm1546, %v1519
      %1649 = vst.msk [vmem:[%s200 + $0x330] sm:$0xff] %vm1546, %v1520
      %1650 = vst.msk [vmem:[%s200 + $0x338] sm:$0xff] %vm1546, %v1521
      %1651 = vst.msk [vmem:[%s200 + $0x340] sm:$0xff] %vm1546, %v1522
      %1652 = vst.msk [vmem:[%s200 + $0x348] sm:$0xff] %vm1546, %v1523
      %1653 = vst.msk [vmem:[%s200 + $0x350] sm:$0xff] %vm1546, %v1524
      %1654 = vst.msk [vmem:[%s200 + $0x358] sm:$0xff] %vm1546, %v1525
      %1655 = vst.msk [vmem:[%s200 + $0x360] sm:$0xff] %vm1546, %v1526
      %1656 = vst.msk [vmem:[%s200 + $0x368] sm:$0xff] %vm1546, %v1527
      %1657 = vst.msk [vmem:[%s200 + $0x370] sm:$0xff] %vm1546, %v1528
      %1658 = vst.msk [vmem:[%s200 + $0x378] sm:$0xff] %vm1546, %v1529
      %1659 = vst.msk [vmem:[%s200 + $0x380] sm:$0xff] %vm1546, %v1530
      %1660 = vst.msk [vmem:[%s200 + $0x388] sm:$0xff] %vm1546, %v1531
      %1661 = vst.msk [vmem:[%s200 + $0x390] sm:$0xff] %vm1546, %v1532
      %1662 = vst.msk [vmem:[%s200 + $0x398] sm:$0xff] %vm1546, %v1533
      %1663 = vst.msk [vmem:[%s200 + $0x3a0] sm:$0xff] %vm1546, %v1534
      %1664 = vst.msk [vmem:[%s200 + $0x3a8] sm:$0xff] %vm1546, %v1535
      %1665 = vst.msk [vmem:[%s200 + $0x3b0] sm:$0xff] %vm1546, %v1536
      %1666 = vst.msk [vmem:[%s200 + $0x3b8] sm:$0xff] %vm1546, %v1537
      %1667 = vst.msk [vmem:[%s200 + $0x3c0] sm:$0xff] %vm1546, %v1538
      %1668 = vst.msk [vmem:[%s200 + $0x3c8] sm:$0xff] %vm1546, %v1539
      %1669 = vst.msk [vmem:[%s200 + $0x3d0] sm:$0xff] %vm1546, %v1540
      %1670 = vst.msk [vmem:[%s200 + $0x3d8] sm:$0xff] %vm1546, %v1541
      %1671 = vst.msk [vmem:[%s200 + $0x3e0] sm:$0xff] %vm1546, %v1542
      %1672 = vst.msk [vmem:[%s200 + $0x3e8] sm:$0xff] %vm1546, %v1543
      %1673 = vst.msk [vmem:[%s200 + $0x3f0] sm:$0xff] %vm1546, %v1544
      %1674 = vst.msk [vmem:[%s200 + $0x3f8] sm:$0xff] %vm1546, %v1545
      %s1675 = smul.u32 64, %s17
      %p1676 = scmp.lt.s32.totalorder %s1675, 127
      %s1677 = scalar_select %p1676, %s1675, 127
      %p1678 = scmp.lt.s32.totalorder %s18, 0
      %s1679 = scalar_select %p1678, %s18, 0
      %s1680 = smul.addr %s1677, 2
      %s1681 = sadd.s32 %s1679, %s1680
      %s1682 = smul.addr %s1681, 8
      %s1683 = scalar_lea.vmem %s2, %s1682
      // Predicated region
      $region29: #{tpu_custom_call.1} parent=27 // pred_check
        %p1684 = pneg %p99
      $region30: #{tpu_custom_call.1} parent=27 // pred_check_branch
        %1686 = sbr.rel (%p1684) target = $region32
      $region31: #{tpu_custom_call.1} parent=27 // pred_region
        %s1687 = smul.u32 64, %s17
      $region32: #{tpu_custom_call.1} parent=27 // pred_fallthru
        _
    $region28: #{tpu_custom_call.1} parent=5 // pred_fallthru
      _
    %p1688 = scmp.le.s32.totalorder 2, %s8
    // Predicated region
    $region33: #{tpu_custom_call.1} parent=5 // pred_check
      %p1689 = pneg %p1688
    $region34: #{tpu_custom_call.1} parent=5 // pred_check_branch
      %1691 = sbr.rel (%p1689) target = $region36
    $region35: #{tpu_custom_call.1} parent=5 // pred_region
      %s1692 = ssub.s32 %s8, 2
      // Predicated region
      $region37: #{tpu_custom_call.1} parent=35 // pred_check
        %p1693 = pneg %p105
      $region38: #{tpu_custom_call.1} parent=35 // pred_check_branch
        %1695 = sbr.rel (%p1693) target = $region40
      $region39: #{tpu_custom_call.1} parent=35 // pred_region
        %s1696 = smul.u32 64, %s19
        %p1697 = scmp.lt.s32.totalorder %s1696, 127
        %s1698 = scalar_select %p1697, %s1696, 127
        %p1699 = scmp.lt.s32.totalorder %s20, 0
        %s1700 = scalar_select %p1699, %s20, 0
        %s1701 = smul.addr %s1698, 2
        %s1702 = sadd.s32 %s1700, %s1701
        %s1703 = smul.addr %s1702, 8
        %s1704 = scalar_lea.vmem %s2, %s1703
      $region40: #{tpu_custom_call.1} parent=35 // pred_fallthru
        _
    $region36: #{tpu_custom_call.1} parent=5 // pred_fallthru
      _
  $region6: #{tpu_custom_call.1} parent=0 // loop_footer
    %s12 = sadd.s32 1, %s8
  $region7: #{tpu_custom_call.1} parent=0 // loop_footer_branch
    %7 = sbr.rel target = $region3
  $region8: #{tpu_custom_call.1} parent=0 // loop_exit
    _

</llo_original>
